<compile_context>
chip_gen: v7x
topology: tpu7x:2x2x1
jax: 0.10.0
libtpu: 0.0.40
codegen_flags: <defaults>
</compile_context>

<pallas_src>
import jax
import jax.numpy as jnp
from jax import lax
from jax.experimental import pallas as pl
from jax.experimental.pallas import tpu as pltpu


_STATIC_UNROLL_MAX_T = 32  # fully unroll the time loop for short sequences


# ----------------------------------------------------------------------------
# Fused kernel: [LSTM x num_layers] -> LayerNorm -> Linear -> LogSoftmax
# ----------------------------------------------------------------------------
def _make_fused_kernel(num_layers, T, B, H):
    def kernel(*refs):
        x_ref = refs[0]                               # (T*B, F) time-major
        layer_refs = [(refs[1 + 3 * l], refs[2 + 3 * l], refs[3 + 3 * l])
                      for l in range(num_layers)]
        base = 1 + 3 * num_layers
        gamma_ref, beta_ref, wd_ref, bd_ref = refs[base:base + 4]
        out_ref = refs[base + 4]                      # (B, n_cls)
        seq_scr = refs[base + 5]                      # VMEM (T*B, H)
        gx_scr = refs[base + 6]                       # VMEM (T*B, 4H)

        h = jnp.zeros((B, H), jnp.float32)

        for l, (wih_ref, whh_ref, b_ref) in enumerate(layer_refs):
            last_layer = l == num_layers - 1
            inp = x_ref[...] if l == 0 else seq_scr[...]

            # Hoisted input projection for ALL time steps at once (one MXU
            # matmul); the bias broadcast also happens once per layer here.
            gx_scr[...] = (
                jnp.dot(inp.astype(jnp.float32), wih_ref[...],
                        preferred_element_type=jnp.float32)
                + b_ref[...])
            w_hh = whh_ref[...]

            h = jnp.zeros((B, H), jnp.float32)
            c = jnp.zeros((B, H), jnp.float32)

            def step(t, h, c, w_hh=w_hh, last_layer=last_layer):
                gates = gx_scr[pl.ds(t * B, B), :] + jnp.dot(
                    h, w_hh, preferred_element_type=jnp.float32)   # (B, 4H)
                # gate order (i, f, o, g): one sigmoid over contiguous 3H
                # lanes, one tanh over the last H lanes.
                sig = jax.nn.sigmoid(gates[:, :3 * H])
                g_in = jnp.tanh(gates[:, 3 * H:])
                i_g = sig[:, 0 * H:1 * H]
                f_g = sig[:, 1 * H:2 * H]
                o_g = sig[:, 2 * H:3 * H]
                c_new = f_g * c + i_g * g_in
                h_new = o_g * jnp.tanh(c_new)
                if not last_layer:
                    # keep the layer output sequence in VMEM for the next
                    # layer's hoisted input projection (never touches HBM).
                    seq_scr[pl.ds(t * B, B), :] = h_new
                return h_new, c_new

            if T <= _STATIC_UNROLL_MAX_T:
                for t in range(T):            # fully static: constant slices
                    h, c = step(t, h, c)
            else:
                h, c = lax.fori_loop(
                    0, T, lambda t, hc: step(t, hc[0], hc[1]), (h, c),
                    unroll=8)

        # ---- head: LayerNorm(H) -> Linear(H, n_cls) -> LogSoftmax ----------
        xh = h                                               # (B, H), t = T-1
        mean = jnp.mean(xh, axis=-1, keepdims=True)
        var = jnp.mean(jnp.square(xh - mean), axis=-1, keepdims=True)
        xn = (xh - mean) * lax.rsqrt(var + 1e-5)
        xn = xn * gamma_ref[...] + beta_ref[...]

        logits = jnp.dot(xn, wd_ref[...],
                         preferred_element_type=jnp.float32) + bd_ref[...]
        m = jnp.max(logits, axis=-1, keepdims=True)
        lse = jnp.log(jnp.sum(jnp.exp(logits - m), axis=-1, keepdims=True)) + m
        out_ref[...] = (logits - lse).astype(out_ref.dtype)

    return kernel


def _fused_forward_call(x_2d, lstm_params, gamma, beta, wd_t, bd, *, T, B):
    H = gamma.shape[-1]
    n_cls = wd_t.shape[-1]
    num_layers = len(lstm_params)

    flat_inputs = [x_2d]
    for (w_ih, w_hh, b) in lstm_params:
        flat_inputs += [w_ih, w_hh, b]
    flat_inputs += [gamma, beta, wd_t, bd]          # all inputs are 2-D

    kernel = _make_fused_kernel(num_layers, T, B, H)
    in_specs = [pl.BlockSpec(a.shape, lambda i: (0, 0)) for a in flat_inputs]

    return pl.pallas_call(
        kernel,
        out_shape=jax.ShapeDtypeStruct((B, n_cls), jnp.float32),
        grid_spec=pltpu.PrefetchScalarGridSpec(
            num_scalar_prefetch=0,
            grid=(1,),
            in_specs=in_specs,
            out_specs=pl.BlockSpec((B, n_cls), lambda i: (0, 0)),
            scratch_shapes=[
                pltpu.VMEM((T * B, H), jnp.float32),      # layer hidden seq
                pltpu.VMEM((T * B, 4 * H), jnp.float32),  # hoisted gate proj
            ],
        ),
        compiler_params=pltpu.CompilerParams(
            dimension_semantics=("arbitrary",)),
    )(*flat_inputs)


# ----------------------------------------------------------------------------
# Parameters: PyTorch-style init + one-time kernel-ready preparation.
# ----------------------------------------------------------------------------
def init_params(key, feat_in, hidden, num_layers, n_classes):
    """PyTorch-layout parameters (LSTM gate order i, f, g, o)."""
    params = {"lstm": []}
    bound = 1.0 / jnp.sqrt(jnp.float32(hidden))
    for layer in range(num_layers):
        f_in = feat_in if layer == 0 else hidden
        key, k1, k2, k3, k4 = jax.random.split(key, 5)
        w_ih = jax.random.uniform(k1, (f_in, 4 * hidden), jnp.float32,
                                  -bound, bound)
        w_hh = jax.random.uniform(k2, (hidden, 4 * hidden), jnp.float32,
                                  -bound, bound)
        b_ih = jax.random.uniform(k3, (4 * hidden,), jnp.float32, -bound, bound)
        b_hh = jax.random.uniform(k4, (4 * hidden,), jnp.float32, -bound, bound)
        params["lstm"].append((w_ih, w_hh, (b_ih + b_hh)[None, :]))

    params["ln_gamma"] = jnp.ones((1, hidden), jnp.float32)
    params["ln_beta"] = jnp.zeros((1, hidden), jnp.float32)

    key, k5, k6 = jax.random.split(key, 3)
    dbound = 1.0 / jnp.sqrt(jnp.float32(hidden))
    params["w_dense"] = jax.random.uniform(k5, (n_classes, hidden), jnp.float32,
                                           -dbound, dbound)
    params["b_dense"] = jax.random.uniform(k6, (n_classes,), jnp.float32,
                                           -dbound, dbound)[None, :]
    return params


def renorm_rows(w, max_norm):
    # torch.renorm(w, p=2, dim=0, maxnorm) — PyTorch also uses the +1e-7 guard.
    norms = jnp.sqrt(jnp.sum(w * w, axis=1, keepdims=True))
    scale = jnp.where(norms > max_norm, max_norm / (norms + 1e-7), 1.0)
    return w * scale


def _permute_gate_cols(a, H):
    # PyTorch gate order (i, f, g, o) -> kernel order (i, f, o, g)
    return jnp.concatenate(
        [a[..., 0:H], a[..., H:2 * H], a[..., 3 * H:4 * H], a[..., 2 * H:3 * H]],
        axis=-1)


def prepare_params(params, hidden, dense_max_norm):
    """One-time (outside jit) prep: gate permutation + dense renorm/transpose."""
    kp = {"lstm": [
        (_permute_gate_cols(w_ih, hidden),
         _permute_gate_cols(w_hh, hidden),
         _permute_gate_cols(b, hidden))
        for (w_ih, w_hh, b) in params["lstm"]]}
    kp["ln_gamma"] = params["ln_gamma"]
    kp["ln_beta"] = params["ln_beta"]
    kp["wd_t"] = jnp.transpose(renorm_rows(params["w_dense"], dense_max_norm))
    kp["b_dense"] = params["b_dense"]
    return kp


# ----------------------------------------------------------------------------
# Forward pass.
# ----------------------------------------------------------------------------
@jax.jit
def lstm_model_forward(x_btc1, kparams):
    """x_btc1: (B, T, C, 1) float32 -> (B, n_classes) log-probabilities."""
    # TODO(synk): training-mode dropout between LSTM layers is not implemented
    # (inference-mode identity only).
    B, T, C, Cc = x_btc1.shape
    F = C * Cc
    # Flatten trailing dims (as speechbrain does for 4-D inputs) and lay the
    # sequence out time-major & 2-D for the kernel; this is one tiny fused XLA
    # copy (256 B here) that keeps the kernel free of in-kernel reshapes.
    x_2d = jnp.transpose(x_btc1.reshape(B, T, F), (1, 0, 2)).reshape(T * B, F)
    return _fused_forward_call(
        x_2d, kparams["lstm"], kparams["ln_gamma"], kparams["ln_beta"],
        kparams["wd_t"], kparams["b_dense"], T=T, B=B)


# ----------------------------------------------------------------------------
# Pure-JAX reference of the PyTorch forward (for correctness check).
# ----------------------------------------------------------------------------
def reference_forward(x_btc1, params, dense_max_norm=0.25):
    B, T, C, Cc = x_btc1.shape
    seq = x_btc1.reshape(B, T, C * Cc)
    with jax.default_matmul_precision("highest"):
        for (w_ih, w_hh, b) in params["lstm"]:
            H = w_hh.shape[0]
            h = jnp.zeros((B, H), jnp.float32)
            c = jnp.zeros((B, H), jnp.float32)
            outs = []
            for t in range(T):
                gates = seq[:, t, :] @ w_ih + h @ w_hh + b
                i = jax.nn.sigmoid(gates[:, :H])
                f = jax.nn.sigmoid(gates[:, H:2 * H])
                g = jnp.tanh(gates[:, 2 * H:3 * H])
                o = jax.nn.sigmoid(gates[:, 3 * H:])
                c = f * c + i * g
                h = o * jnp.tanh(c)
                outs.append(h)
            seq = jnp.stack(outs, axis=1)
        hl = seq[:, -1, :]
        mean = hl.mean(-1, keepdims=True)
        var = ((hl - mean) ** 2).mean(-1, keepdims=True)
        xn = (hl - mean) / jnp.sqrt(var + 1e-5)
        xn = xn * params["ln_gamma"] + params["ln_beta"]
        wd = renorm_rows(params["w_dense"], dense_max_norm)
        logits = xn @ wd.T + params["b_dense"]
    return jax.nn.log_softmax(logits, axis=1)


if __name__ == "__main__":
    # Small shapes consistent with (batch, time, EEG channel, 1)
    B, T, C = 2, 8, 4
    rnn_neurons = 32
    rnn_layers = 2
    n_classes = 4
    dense_max_norm = 0.25

    key = jax.random.PRNGKey(0)
    kx, kp = jax.random.split(key)
    x = jax.random.normal(kx, (B, T, C, 1), jnp.float32)

    raw = init_params(kp, feat_in=C * 1, hidden=rnn_neurons,
                      num_layers=rnn_layers, n_classes=n_classes)
    kparams = prepare_params(raw, hidden=rnn_neurons,
                             dense_max_norm=dense_max_norm)

    out = jax.block_until_ready(lstm_model_forward(x, kparams))
    assert out.shape == (B, n_classes)
    # log-softmax sanity: rows should exponentiate-sum to 1
    assert jnp.allclose(jnp.sum(jnp.exp(out), axis=1), 1.0, atol=1e-4)
    # parity with the pure-JAX reference of the PyTorch forward
    ref = reference_forward(x, raw, dense_max_norm)
    assert jnp.allclose(out, ref, atol=2e-3, rtol=2e-3)
    print("KERNEL_OK")
</pallas_src>

<mosaic_0001>
module attributes {stable_mosaic.version = 11 : i64} {
  func.func @kernel(%arg0: i32, %arg1: memref<16x4xf32, #tpu.memory_space<vmem>>, %arg2: memref<4x128xf32, #tpu.memory_space<vmem>>, %arg3: memref<32x128xf32, #tpu.memory_space<vmem>>, %arg4: memref<1x128xf32, #tpu.memory_space<vmem>>, %arg5: memref<32x128xf32, #tpu.memory_space<vmem>>, %arg6: memref<32x128xf32, #tpu.memory_space<vmem>>, %arg7: memref<1x128xf32, #tpu.memory_space<vmem>>, %arg8: memref<1x32xf32, #tpu.memory_space<vmem>>, %arg9: memref<1x32xf32, #tpu.memory_space<vmem>>, %arg10: memref<32x4xf32, #tpu.memory_space<vmem>>, %arg11: memref<1x4xf32, #tpu.memory_space<vmem>>, %arg12: memref<2x4xf32, #tpu.memory_space<vmem>>, %arg13: memref<16x32xf32, #tpu.memory_space<vmem>>, %arg14: memref<16x128xf32, #tpu.memory_space<vmem>>) attributes {dimension_semantics = [#tpu.dimension_semantics<arbitrary>], iteration_bounds = array<i64: 1>, scalar_prefetch = 0 : i64, scratch_operands = 2 : i64, tpu.core_type = #tpu.core_type<tc>, window_params = [{pipeline_mode = #tpu.pipeline_mode<synchronous>, transform_indices = @transform_0, window_bounds = array<i64: 16, 4>}, {pipeline_mode = #tpu.pipeline_mode<synchronous>, transform_indices = @transform_1, window_bounds = array<i64: 4, 128>}, {pipeline_mode = #tpu.pipeline_mode<synchronous>, transform_indices = @transform_2, window_bounds = array<i64: 32, 128>}, {pipeline_mode = #tpu.pipeline_mode<synchronous>, transform_indices = @transform_3, window_bounds = array<i64: 1, 128>}, {pipeline_mode = #tpu.pipeline_mode<synchronous>, transform_indices = @transform_4, window_bounds = array<i64: 32, 128>}, {pipeline_mode = #tpu.pipeline_mode<synchronous>, transform_indices = @transform_5, window_bounds = array<i64: 32, 128>}, {pipeline_mode = #tpu.pipeline_mode<synchronous>, transform_indices = @transform_6, window_bounds = array<i64: 1, 128>}, {pipeline_mode = #tpu.pipeline_mode<synchronous>, transform_indices = @transform_7, window_bounds = array<i64: 1, 32>}, {pipeline_mode = #tpu.pipeline_mode<synchronous>, transform_indices = @transform_8, window_bounds = array<i64: 1, 32>}, {pipeline_mode = #tpu.pipeline_mode<synchronous>, transform_indices = @transform_9, window_bounds = array<i64: 32, 4>}, {pipeline_mode = #tpu.pipeline_mode<synchronous>, transform_indices = @transform_10, window_bounds = array<i64: 1, 4>}, {pipeline_mode = #tpu.pipeline_mode<synchronous>, transform_indices = @transform_11, window_bounds = array<i64: 2, 4>}]} {
    %c0 = arith.constant 0 : index
    %c0_0 = arith.constant 0 : index
    %0 = vector.load %arg1[%c0, %c0_0] : memref<16x4xf32, #tpu.memory_space<vmem>>, vector<16x4xf32>
    %c0_1 = arith.constant 0 : index
    %c0_2 = arith.constant 0 : index
    %1 = vector.load %arg2[%c0_1, %c0_2] : memref<4x128xf32, #tpu.memory_space<vmem>>, vector<4x128xf32>
    %cst = arith.constant dense<0.000000e+00> : vector<16x128xf32>
    %2 = tpu.matmul %0, %1, %cst {dimension_numbers = #tpu.dot_dimension_numbers<[1], [0], [0], [1], [0, 0, 1, 1], [], []>} : vector<16x4xf32>, vector<4x128xf32>, vector<16x128xf32> -> vector<16x128xf32>
    %c0_3 = arith.constant 0 : index
    %c0_4 = arith.constant 0 : index
    %3 = vector.load %arg4[%c0_3, %c0_4] : memref<1x128xf32, #tpu.memory_space<vmem>>, vector<1x128xf32>
    %4 = vector.broadcast %3 : vector<1x128xf32> to vector<16x128xf32>
    %5 = arith.addf %2, %4 : vector<16x128xf32>
    %c0_5 = arith.constant 0 : index
    %c0_6 = arith.constant 0 : index
    %6 = vector.load %arg14[%c0_5, %c0_6] : memref<16x128xf32, #tpu.memory_space<vmem>>, vector<16x128xf32>
    tpu.vector_store %arg14[%c0_5, %c0_6], %5 {strides = array<i32>} : memref<16x128xf32, #tpu.memory_space<vmem>>, vector<16x128xf32>,
    %c0_7 = arith.constant 0 : index
    %c0_8 = arith.constant 0 : index
    %7 = vector.load %arg3[%c0_7, %c0_8] : memref<32x128xf32, #tpu.memory_space<vmem>>, vector<32x128xf32>
    %cst_9 = arith.constant 0.000000e+00 : f32
    %8 = vector.broadcast %cst_9 : f32 to vector<2x32xf32>
    %cst_10 = arith.constant 0.000000e+00 : f32
    %9 = vector.broadcast %cst_10 : f32 to vector<2x32xf32>
    %c0_11 = arith.constant 0 : index
    %c0_12 = arith.constant 0 : index
    %10 = vector.load %arg14[%c0_11, %c0_12] : memref<16x128xf32, #tpu.memory_space<vmem>>, vector<2x128xf32>
    %cst_13 = arith.constant dense<0.000000e+00> : vector<2x128xf32>
    %11 = tpu.matmul %8, %7, %cst_13 {dimension_numbers = #tpu.dot_dimension_numbers<[1], [0], [0], [1], [0, 0, 1, 1], [], []>} : vector<2x32xf32>, vector<32x128xf32>, vector<2x128xf32> -> vector<2x128xf32>
    %12 = arith.addf %10, %11 : vector<2x128xf32>
    %13 = vector.extract_strided_slice %12 {offsets = [0, 0], sizes = [2, 96], strides = [1, 1]} : vector<2x128xf32> to vector<2x96xf32>
    %14 = arith.negf %13 : vector<2x96xf32>
    %15 = math.exp %14 : vector<2x96xf32>
    %cst_14 = arith.constant 1.000000e+00 : f32
    %16 = vector.broadcast %cst_14 : f32 to vector<2x96xf32>
    %17 = arith.addf %16, %15 : vector<2x96xf32>
    %18 = arith.divf %16, %17 : vector<2x96xf32>
    %19 = vector.extract_strided_slice %12 {offsets = [0, 96], sizes = [2, 32], strides = [1, 1]} : vector<2x128xf32> to vector<2x32xf32>
    %20 = math.tanh %19 : vector<2x32xf32>
    %21 = vector.extract_strided_slice %18 {offsets = [0, 0], sizes = [2, 32], strides = [1, 1]} : vector<2x96xf32> to vector<2x32xf32>
    %22 = vector.extract_strided_slice %18 {offsets = [0, 32], sizes = [2, 32], strides = [1, 1]} : vector<2x96xf32> to vector<2x32xf32>
    %23 = vector.extract_strided_slice %18 {offsets = [0, 64], sizes = [2, 32], strides = [1, 1]} : vector<2x96xf32> to vector<2x32xf32>
    %24 = arith.mulf %22, %9 : vector<2x32xf32>
    %25 = arith.mulf %21, %20 : vector<2x32xf32>
    %26 = arith.addf %24, %25 : vector<2x32xf32>
    %27 = math.tanh %26 : vector<2x32xf32>
    %28 = arith.mulf %23, %27 : vector<2x32xf32>
    %c0_15 = arith.constant 0 : index
    %c0_16 = arith.constant 0 : index
    %29 = vector.load %arg13[%c0_15, %c0_16] : memref<16x32xf32, #tpu.memory_space<vmem>>, vector<2x32xf32>
    tpu.vector_store %arg13[%c0_15, %c0_16], %28 {strides = array<i32>} : memref<16x32xf32, #tpu.memory_space<vmem>>, vector<2x32xf32>,
    %c2 = arith.constant 2 : index
    %c0_17 = arith.constant 0 : index
    %30 = vector.load %arg14[%c2, %c0_17] : memref<16x128xf32, #tpu.memory_space<vmem>>, vector<2x128xf32>
    %cst_18 = arith.constant dense<0.000000e+00> : vector<2x128xf32>
    %31 = tpu.matmul %28, %7, %cst_18 {dimension_numbers = #tpu.dot_dimension_numbers<[1], [0], [0], [1], [0, 0, 1, 1], [], []>} : vector<2x32xf32>, vector<32x128xf32>, vector<2x128xf32> -> vector<2x128xf32>
    %32 = arith.addf %30, %31 : vector<2x128xf32>
    %33 = vector.extract_strided_slice %32 {offsets = [0, 0], sizes = [2, 96], strides = [1, 1]} : vector<2x128xf32> to vector<2x96xf32>
    %34 = arith.negf %33 : vector<2x96xf32>
    %35 = math.exp %34 : vector<2x96xf32>
    %cst_19 = arith.constant 1.000000e+00 : f32
    %36 = vector.broadcast %cst_19 : f32 to vector<2x96xf32>
    %37 = arith.addf %36, %35 : vector<2x96xf32>
    %38 = arith.divf %36, %37 : vector<2x96xf32>
    %39 = vector.extract_strided_slice %32 {offsets = [0, 96], sizes = [2, 32], strides = [1, 1]} : vector<2x128xf32> to vector<2x32xf32>
    %40 = math.tanh %39 : vector<2x32xf32>
    %41 = vector.extract_strided_slice %38 {offsets = [0, 0], sizes = [2, 32], strides = [1, 1]} : vector<2x96xf32> to vector<2x32xf32>
    %42 = vector.extract_strided_slice %38 {offsets = [0, 32], sizes = [2, 32], strides = [1, 1]} : vector<2x96xf32> to vector<2x32xf32>
    %43 = vector.extract_strided_slice %38 {offsets = [0, 64], sizes = [2, 32], strides = [1, 1]} : vector<2x96xf32> to vector<2x32xf32>
    %44 = arith.mulf %42, %26 : vector<2x32xf32>
    %45 = arith.mulf %41, %40 : vector<2x32xf32>
    %46 = arith.addf %44, %45 : vector<2x32xf32>
    %47 = math.tanh %46 : vector<2x32xf32>
    %48 = arith.mulf %43, %47 : vector<2x32xf32>
    %c2_20 = arith.constant 2 : index
    %c0_21 = arith.constant 0 : index
    %49 = vector.load %arg13[%c2_20, %c0_21] : memref<16x32xf32, #tpu.memory_space<vmem>>, vector<2x32xf32>
    tpu.vector_store %arg13[%c2_20, %c0_21], %48 {strides = array<i32>} : memref<16x32xf32, #tpu.memory_space<vmem>>, vector<2x32xf32>,
    %c4 = arith.constant 4 : index
    %c0_22 = arith.constant 0 : index
    %50 = vector.load %arg14[%c4, %c0_22] : memref<16x128xf32, #tpu.memory_space<vmem>>, vector<2x128xf32>
    %cst_23 = arith.constant dense<0.000000e+00> : vector<2x128xf32>
    %51 = tpu.matmul %48, %7, %cst_23 {dimension_numbers = #tpu.dot_dimension_numbers<[1], [0], [0], [1], [0, 0, 1, 1], [], []>} : vector<2x32xf32>, vector<32x128xf32>, vector<2x128xf32> -> vector<2x128xf32>
    %52 = arith.addf %50, %51 : vector<2x128xf32>
    %53 = vector.extract_strided_slice %52 {offsets = [0, 0], sizes = [2, 96], strides = [1, 1]} : vector<2x128xf32> to vector<2x96xf32>
    %54 = arith.negf %53 : vector<2x96xf32>
    %55 = math.exp %54 : vector<2x96xf32>
    %cst_24 = arith.constant 1.000000e+00 : f32
    %56 = vector.broadcast %cst_24 : f32 to vector<2x96xf32>
    %57 = arith.addf %56, %55 : vector<2x96xf32>
    %58 = arith.divf %56, %57 : vector<2x96xf32>
    %59 = vector.extract_strided_slice %52 {offsets = [0, 96], sizes = [2, 32], strides = [1, 1]} : vector<2x128xf32> to vector<2x32xf32>
    %60 = math.tanh %59 : vector<2x32xf32>
    %61 = vector.extract_strided_slice %58 {offsets = [0, 0], sizes = [2, 32], strides = [1, 1]} : vector<2x96xf32> to vector<2x32xf32>
    %62 = vector.extract_strided_slice %58 {offsets = [0, 32], sizes = [2, 32], strides = [1, 1]} : vector<2x96xf32> to vector<2x32xf32>
    %63 = vector.extract_strided_slice %58 {offsets = [0, 64], sizes = [2, 32], strides = [1, 1]} : vector<2x96xf32> to vector<2x32xf32>
    %64 = arith.mulf %62, %46 : vector<2x32xf32>
    %65 = arith.mulf %61, %60 : vector<2x32xf32>
    %66 = arith.addf %64, %65 : vector<2x32xf32>
    %67 = math.tanh %66 : vector<2x32xf32>
    %68 = arith.mulf %63, %67 : vector<2x32xf32>
    %c4_25 = arith.constant 4 : index
    %c0_26 = arith.constant 0 : index
    %69 = vector.load %arg13[%c4_25, %c0_26] : memref<16x32xf32, #tpu.memory_space<vmem>>, vector<2x32xf32>
    tpu.vector_store %arg13[%c4_25, %c0_26], %68 {strides = array<i32>} : memref<16x32xf32, #tpu.memory_space<vmem>>, vector<2x32xf32>,
    %c6 = arith.constant 6 : index
    %c0_27 = arith.constant 0 : index
    %70 = vector.load %arg14[%c6, %c0_27] : memref<16x128xf32, #tpu.memory_space<vmem>>, vector<2x128xf32>
    %cst_28 = arith.constant dense<0.000000e+00> : vector<2x128xf32>
    %71 = tpu.matmul %68, %7, %cst_28 {dimension_numbers = #tpu.dot_dimension_numbers<[1], [0], [0], [1], [0, 0, 1, 1], [], []>} : vector<2x32xf32>, vector<32x128xf32>, vector<2x128xf32> -> vector<2x128xf32>
    %72 = arith.addf %70, %71 : vector<2x128xf32>
    %73 = vector.extract_strided_slice %72 {offsets = [0, 0], sizes = [2, 96], strides = [1, 1]} : vector<2x128xf32> to vector<2x96xf32>
    %74 = arith.negf %73 : vector<2x96xf32>
    %75 = math.exp %74 : vector<2x96xf32>
    %cst_29 = arith.constant 1.000000e+00 : f32
    %76 = vector.broadcast %cst_29 : f32 to vector<2x96xf32>
    %77 = arith.addf %76, %75 : vector<2x96xf32>
    %78 = arith.divf %76, %77 : vector<2x96xf32>
    %79 = vector.extract_strided_slice %72 {offsets = [0, 96], sizes = [2, 32], strides = [1, 1]} : vector<2x128xf32> to vector<2x32xf32>
    %80 = math.tanh %79 : vector<2x32xf32>
    %81 = vector.extract_strided_slice %78 {offsets = [0, 0], sizes = [2, 32], strides = [1, 1]} : vector<2x96xf32> to vector<2x32xf32>
    %82 = vector.extract_strided_slice %78 {offsets = [0, 32], sizes = [2, 32], strides = [1, 1]} : vector<2x96xf32> to vector<2x32xf32>
    %83 = vector.extract_strided_slice %78 {offsets = [0, 64], sizes = [2, 32], strides = [1, 1]} : vector<2x96xf32> to vector<2x32xf32>
    %84 = arith.mulf %82, %66 : vector<2x32xf32>
    %85 = arith.mulf %81, %80 : vector<2x32xf32>
    %86 = arith.addf %84, %85 : vector<2x32xf32>
    %87 = math.tanh %86 : vector<2x32xf32>
    %88 = arith.mulf %83, %87 : vector<2x32xf32>
    %c6_30 = arith.constant 6 : index
    %c0_31 = arith.constant 0 : index
    %89 = vector.load %arg13[%c6_30, %c0_31] : memref<16x32xf32, #tpu.memory_space<vmem>>, vector<2x32xf32>
    tpu.vector_store %arg13[%c6_30, %c0_31], %88 {strides = array<i32>} : memref<16x32xf32, #tpu.memory_space<vmem>>, vector<2x32xf32>,
    %c8 = arith.constant 8 : index
    %c0_32 = arith.constant 0 : index
    %90 = vector.load %arg14[%c8, %c0_32] : memref<16x128xf32, #tpu.memory_space<vmem>>, vector<2x128xf32>
    %cst_33 = arith.constant dense<0.000000e+00> : vector<2x128xf32>
    %91 = tpu.matmul %88, %7, %cst_33 {dimension_numbers = #tpu.dot_dimension_numbers<[1], [0], [0], [1], [0, 0, 1, 1], [], []>} : vector<2x32xf32>, vector<32x128xf32>, vector<2x128xf32> -> vector<2x128xf32>
    %92 = arith.addf %90, %91 : vector<2x128xf32>
    %93 = vector.extract_strided_slice %92 {offsets = [0, 0], sizes = [2, 96], strides = [1, 1]} : vector<2x128xf32> to vector<2x96xf32>
    %94 = arith.negf %93 : vector<2x96xf32>
    %95 = math.exp %94 : vector<2x96xf32>
    %cst_34 = arith.constant 1.000000e+00 : f32
    %96 = vector.broadcast %cst_34 : f32 to vector<2x96xf32>
    %97 = arith.addf %96, %95 : vector<2x96xf32>
    %98 = arith.divf %96, %97 : vector<2x96xf32>
    %99 = vector.extract_strided_slice %92 {offsets = [0, 96], sizes = [2, 32], strides = [1, 1]} : vector<2x128xf32> to vector<2x32xf32>
    %100 = math.tanh %99 : vector<2x32xf32>
    %101 = vector.extract_strided_slice %98 {offsets = [0, 0], sizes = [2, 32], strides = [1, 1]} : vector<2x96xf32> to vector<2x32xf32>
    %102 = vector.extract_strided_slice %98 {offsets = [0, 32], sizes = [2, 32], strides = [1, 1]} : vector<2x96xf32> to vector<2x32xf32>
    %103 = vector.extract_strided_slice %98 {offsets = [0, 64], sizes = [2, 32], strides = [1, 1]} : vector<2x96xf32> to vector<2x32xf32>
    %104 = arith.mulf %102, %86 : vector<2x32xf32>
    %105 = arith.mulf %101, %100 : vector<2x32xf32>
    %106 = arith.addf %104, %105 : vector<2x32xf32>
    %107 = math.tanh %106 : vector<2x32xf32>
    %108 = arith.mulf %103, %107 : vector<2x32xf32>
    %c8_35 = arith.constant 8 : index
    %c0_36 = arith.constant 0 : index
    %109 = vector.load %arg13[%c8_35, %c0_36] : memref<16x32xf32, #tpu.memory_space<vmem>>, vector<2x32xf32>
    tpu.vector_store %arg13[%c8_35, %c0_36], %108 {strides = array<i32>} : memref<16x32xf32, #tpu.memory_space<vmem>>, vector<2x32xf32>,
    %c10 = arith.constant 10 : index
    %c0_37 = arith.constant 0 : index
    %110 = vector.load %arg14[%c10, %c0_37] : memref<16x128xf32, #tpu.memory_space<vmem>>, vector<2x128xf32>
    %cst_38 = arith.constant dense<0.000000e+00> : vector<2x128xf32>
    %111 = tpu.matmul %108, %7, %cst_38 {dimension_numbers = #tpu.dot_dimension_numbers<[1], [0], [0], [1], [0, 0, 1, 1], [], []>} : vector<2x32xf32>, vector<32x128xf32>, vector<2x128xf32> -> vector<2x128xf32>
    %112 = arith.addf %110, %111 : vector<2x128xf32>
    %113 = vector.extract_strided_slice %112 {offsets = [0, 0], sizes = [2, 96], strides = [1, 1]} : vector<2x128xf32> to vector<2x96xf32>
    %114 = arith.negf %113 : vector<2x96xf32>
    %115 = math.exp %114 : vector<2x96xf32>
    %cst_39 = arith.constant 1.000000e+00 : f32
    %116 = vector.broadcast %cst_39 : f32 to vector<2x96xf32>
    %117 = arith.addf %116, %115 : vector<2x96xf32>
    %118 = arith.divf %116, %117 : vector<2x96xf32>
    %119 = vector.extract_strided_slice %112 {offsets = [0, 96], sizes = [2, 32], strides = [1, 1]} : vector<2x128xf32> to vector<2x32xf32>
    %120 = math.tanh %119 : vector<2x32xf32>
    %121 = vector.extract_strided_slice %118 {offsets = [0, 0], sizes = [2, 32], strides = [1, 1]} : vector<2x96xf32> to vector<2x32xf32>
    %122 = vector.extract_strided_slice %118 {offsets = [0, 32], sizes = [2, 32], strides = [1, 1]} : vector<2x96xf32> to vector<2x32xf32>
    %123 = vector.extract_strided_slice %118 {offsets = [0, 64], sizes = [2, 32], strides = [1, 1]} : vector<2x96xf32> to vector<2x32xf32>
    %124 = arith.mulf %122, %106 : vector<2x32xf32>
    %125 = arith.mulf %121, %120 : vector<2x32xf32>
    %126 = arith.addf %124, %125 : vector<2x32xf32>
    %127 = math.tanh %126 : vector<2x32xf32>
    %128 = arith.mulf %123, %127 : vector<2x32xf32>
    %c10_40 = arith.constant 10 : index
    %c0_41 = arith.constant 0 : index
    %129 = vector.load %arg13[%c10_40, %c0_41] : memref<16x32xf32, #tpu.memory_space<vmem>>, vector<2x32xf32>
    tpu.vector_store %arg13[%c10_40, %c0_41], %128 {strides = array<i32>} : memref<16x32xf32, #tpu.memory_space<vmem>>, vector<2x32xf32>,
    %c12 = arith.constant 12 : index
    %c0_42 = arith.constant 0 : index
    %130 = vector.load %arg14[%c12, %c0_42] : memref<16x128xf32, #tpu.memory_space<vmem>>, vector<2x128xf32>
    %cst_43 = arith.constant dense<0.000000e+00> : vector<2x128xf32>
    %131 = tpu.matmul %128, %7, %cst_43 {dimension_numbers = #tpu.dot_dimension_numbers<[1], [0], [0], [1], [0, 0, 1, 1], [], []>} : vector<2x32xf32>, vector<32x128xf32>, vector<2x128xf32> -> vector<2x128xf32>
    %132 = arith.addf %130, %131 : vector<2x128xf32>
    %133 = vector.extract_strided_slice %132 {offsets = [0, 0], sizes = [2, 96], strides = [1, 1]} : vector<2x128xf32> to vector<2x96xf32>
    %134 = arith.negf %133 : vector<2x96xf32>
    %135 = math.exp %134 : vector<2x96xf32>
    %cst_44 = arith.constant 1.000000e+00 : f32
    %136 = vector.broadcast %cst_44 : f32 to vector<2x96xf32>
    %137 = arith.addf %136, %135 : vector<2x96xf32>
    %138 = arith.divf %136, %137 : vector<2x96xf32>
    %139 = vector.extract_strided_slice %132 {offsets = [0, 96], sizes = [2, 32], strides = [1, 1]} : vector<2x128xf32> to vector<2x32xf32>
    %140 = math.tanh %139 : vector<2x32xf32>
    %141 = vector.extract_strided_slice %138 {offsets = [0, 0], sizes = [2, 32], strides = [1, 1]} : vector<2x96xf32> to vector<2x32xf32>
    %142 = vector.extract_strided_slice %138 {offsets = [0, 32], sizes = [2, 32], strides = [1, 1]} : vector<2x96xf32> to vector<2x32xf32>
    %143 = vector.extract_strided_slice %138 {offsets = [0, 64], sizes = [2, 32], strides = [1, 1]} : vector<2x96xf32> to vector<2x32xf32>
    %144 = arith.mulf %142, %126 : vector<2x32xf32>
    %145 = arith.mulf %141, %140 : vector<2x32xf32>
    %146 = arith.addf %144, %145 : vector<2x32xf32>
    %147 = math.tanh %146 : vector<2x32xf32>
    %148 = arith.mulf %143, %147 : vector<2x32xf32>
    %c12_45 = arith.constant 12 : index
    %c0_46 = arith.constant 0 : index
    %149 = vector.load %arg13[%c12_45, %c0_46] : memref<16x32xf32, #tpu.memory_space<vmem>>, vector<2x32xf32>
    tpu.vector_store %arg13[%c12_45, %c0_46], %148 {strides = array<i32>} : memref<16x32xf32, #tpu.memory_space<vmem>>, vector<2x32xf32>,
    %c14 = arith.constant 14 : index
    %c0_47 = arith.constant 0 : index
    %150 = vector.load %arg14[%c14, %c0_47] : memref<16x128xf32, #tpu.memory_space<vmem>>, vector<2x128xf32>
    %cst_48 = arith.constant dense<0.000000e+00> : vector<2x128xf32>
    %151 = tpu.matmul %148, %7, %cst_48 {dimension_numbers = #tpu.dot_dimension_numbers<[1], [0], [0], [1], [0, 0, 1, 1], [], []>} : vector<2x32xf32>, vector<32x128xf32>, vector<2x128xf32> -> vector<2x128xf32>
    %152 = arith.addf %150, %151 : vector<2x128xf32>
    %153 = vector.extract_strided_slice %152 {offsets = [0, 0], sizes = [2, 96], strides = [1, 1]} : vector<2x128xf32> to vector<2x96xf32>
    %154 = arith.negf %153 : vector<2x96xf32>
    %155 = math.exp %154 : vector<2x96xf32>
    %cst_49 = arith.constant 1.000000e+00 : f32
    %156 = vector.broadcast %cst_49 : f32 to vector<2x96xf32>
    %157 = arith.addf %156, %155 : vector<2x96xf32>
    %158 = arith.divf %156, %157 : vector<2x96xf32>
    %159 = vector.extract_strided_slice %152 {offsets = [0, 96], sizes = [2, 32], strides = [1, 1]} : vector<2x128xf32> to vector<2x32xf32>
    %160 = math.tanh %159 : vector<2x32xf32>
    %161 = vector.extract_strided_slice %158 {offsets = [0, 0], sizes = [2, 32], strides = [1, 1]} : vector<2x96xf32> to vector<2x32xf32>
    %162 = vector.extract_strided_slice %158 {offsets = [0, 32], sizes = [2, 32], strides = [1, 1]} : vector<2x96xf32> to vector<2x32xf32>
    %163 = vector.extract_strided_slice %158 {offsets = [0, 64], sizes = [2, 32], strides = [1, 1]} : vector<2x96xf32> to vector<2x32xf32>
    %164 = arith.mulf %162, %146 : vector<2x32xf32>
    %165 = arith.mulf %161, %160 : vector<2x32xf32>
    %166 = arith.addf %164, %165 : vector<2x32xf32>
    %167 = math.tanh %166 : vector<2x32xf32>
    %168 = arith.mulf %163, %167 : vector<2x32xf32>
    %c14_50 = arith.constant 14 : index
    %c0_51 = arith.constant 0 : index
    %169 = vector.load %arg13[%c14_50, %c0_51] : memref<16x32xf32, #tpu.memory_space<vmem>>, vector<2x32xf32>
    tpu.vector_store %arg13[%c14_50, %c0_51], %168 {strides = array<i32>} : memref<16x32xf32, #tpu.memory_space<vmem>>, vector<2x32xf32>,
    %c0_52 = arith.constant 0 : index
    %c0_53 = arith.constant 0 : index
    %170 = vector.load %arg13[%c0_52, %c0_53] : memref<16x32xf32, #tpu.memory_space<vmem>>, vector<16x32xf32>
    %c0_54 = arith.constant 0 : index
    %c0_55 = arith.constant 0 : index
    %171 = vector.load %arg5[%c0_54, %c0_55] : memref<32x128xf32, #tpu.memory_space<vmem>>, vector<32x128xf32>
    %cst_56 = arith.constant dense<0.000000e+00> : vector<16x128xf32>
    %172 = tpu.matmul %170, %171, %cst_56 {dimension_numbers = #tpu.dot_dimension_numbers<[1], [0], [0], [1], [0, 0, 1, 1], [], []>} : vector<16x32xf32>, vector<32x128xf32>, vector<16x128xf32> -> vector<16x128xf32>
    %c0_57 = arith.constant 0 : index
    %c0_58 = arith.constant 0 : index
    %173 = vector.load %arg7[%c0_57, %c0_58] : memref<1x128xf32, #tpu.memory_space<vmem>>, vector<1x128xf32>
    %174 = vector.broadcast %173 : vector<1x128xf32> to vector<16x128xf32>
    %175 = arith.addf %172, %174 : vector<16x128xf32>
    %c0_59 = arith.constant 0 : index
    %c0_60 = arith.constant 0 : index
    %176 = vector.load %arg14[%c0_59, %c0_60] : memref<16x128xf32, #tpu.memory_space<vmem>>, vector<16x128xf32>
    tpu.vector_store %arg14[%c0_59, %c0_60], %175 {strides = array<i32>} : memref<16x128xf32, #tpu.memory_space<vmem>>, vector<16x128xf32>,
    %c0_61 = arith.constant 0 : index
    %c0_62 = arith.constant 0 : index
    %177 = vector.load %arg6[%c0_61, %c0_62] : memref<32x128xf32, #tpu.memory_space<vmem>>, vector<32x128xf32>
    %cst_63 = arith.constant 0.000000e+00 : f32
    %178 = vector.broadcast %cst_63 : f32 to vector<2x32xf32>
    %cst_64 = arith.constant 0.000000e+00 : f32
    %179 = vector.broadcast %cst_64 : f32 to vector<2x32xf32>
    %c0_65 = arith.constant 0 : index
    %c0_66 = arith.constant 0 : index
    %180 = vector.load %arg14[%c0_65, %c0_66] : memref<16x128xf32, #tpu.memory_space<vmem>>, vector<2x128xf32>
    %cst_67 = arith.constant dense<0.000000e+00> : vector<2x128xf32>
    %181 = tpu.matmul %178, %177, %cst_67 {dimension_numbers = #tpu.dot_dimension_numbers<[1], [0], [0], [1], [0, 0, 1, 1], [], []>} : vector<2x32xf32>, vector<32x128xf32>, vector<2x128xf32> -> vector<2x128xf32>
    %182 = arith.addf %180, %181 : vector<2x128xf32>
    %183 = vector.extract_strided_slice %182 {offsets = [0, 0], sizes = [2, 96], strides = [1, 1]} : vector<2x128xf32> to vector<2x96xf32>
    %184 = arith.negf %183 : vector<2x96xf32>
    %185 = math.exp %184 : vector<2x96xf32>
    %cst_68 = arith.constant 1.000000e+00 : f32
    %186 = vector.broadcast %cst_68 : f32 to vector<2x96xf32>
    %187 = arith.addf %186, %185 : vector<2x96xf32>
    %188 = arith.divf %186, %187 : vector<2x96xf32>
    %189 = vector.extract_strided_slice %182 {offsets = [0, 96], sizes = [2, 32], strides = [1, 1]} : vector<2x128xf32> to vector<2x32xf32>
    %190 = math.tanh %189 : vector<2x32xf32>
    %191 = vector.extract_strided_slice %188 {offsets = [0, 0], sizes = [2, 32], strides = [1, 1]} : vector<2x96xf32> to vector<2x32xf32>
    %192 = vector.extract_strided_slice %188 {offsets = [0, 32], sizes = [2, 32], strides = [1, 1]} : vector<2x96xf32> to vector<2x32xf32>
    %193 = vector.extract_strided_slice %188 {offsets = [0, 64], sizes = [2, 32], strides = [1, 1]} : vector<2x96xf32> to vector<2x32xf32>
    %194 = arith.mulf %192, %179 : vector<2x32xf32>
    %195 = arith.mulf %191, %190 : vector<2x32xf32>
    %196 = arith.addf %194, %195 : vector<2x32xf32>
    %197 = math.tanh %196 : vector<2x32xf32>
    %198 = arith.mulf %193, %197 : vector<2x32xf32>
    %c2_69 = arith.constant 2 : index
    %c0_70 = arith.constant 0 : index
    %199 = vector.load %arg14[%c2_69, %c0_70] : memref<16x128xf32, #tpu.memory_space<vmem>>, vector<2x128xf32>
    %cst_71 = arith.constant dense<0.000000e+00> : vector<2x128xf32>
    %200 = tpu.matmul %198, %177, %cst_71 {dimension_numbers = #tpu.dot_dimension_numbers<[1], [0], [0], [1], [0, 0, 1, 1], [], []>} : vector<2x32xf32>, vector<32x128xf32>, vector<2x128xf32> -> vector<2x128xf32>
    %201 = arith.addf %199, %200 : vector<2x128xf32>
    %202 = vector.extract_strided_slice %201 {offsets = [0, 0], sizes = [2, 96], strides = [1, 1]} : vector<2x128xf32> to vector<2x96xf32>
    %203 = arith.negf %202 : vector<2x96xf32>
    %204 = math.exp %203 : vector<2x96xf32>
    %cst_72 = arith.constant 1.000000e+00 : f32
    %205 = vector.broadcast %cst_72 : f32 to vector<2x96xf32>
    %206 = arith.addf %205, %204 : vector<2x96xf32>
    %207 = arith.divf %205, %206 : vector<2x96xf32>
    %208 = vector.extract_strided_slice %201 {offsets = [0, 96], sizes = [2, 32], strides = [1, 1]} : vector<2x128xf32> to vector<2x32xf32>
    %209 = math.tanh %208 : vector<2x32xf32>
    %210 = vector.extract_strided_slice %207 {offsets = [0, 0], sizes = [2, 32], strides = [1, 1]} : vector<2x96xf32> to vector<2x32xf32>
    %211 = vector.extract_strided_slice %207 {offsets = [0, 32], sizes = [2, 32], strides = [1, 1]} : vector<2x96xf32> to vector<2x32xf32>
    %212 = vector.extract_strided_slice %207 {offsets = [0, 64], sizes = [2, 32], strides = [1, 1]} : vector<2x96xf32> to vector<2x32xf32>
    %213 = arith.mulf %211, %196 : vector<2x32xf32>
    %214 = arith.mulf %210, %209 : vector<2x32xf32>
    %215 = arith.addf %213, %214 : vector<2x32xf32>
    %216 = math.tanh %215 : vector<2x32xf32>
    %217 = arith.mulf %212, %216 : vector<2x32xf32>
    %c4_73 = arith.constant 4 : index
    %c0_74 = arith.constant 0 : index
    %218 = vector.load %arg14[%c4_73, %c0_74] : memref<16x128xf32, #tpu.memory_space<vmem>>, vector<2x128xf32>
    %cst_75 = arith.constant dense<0.000000e+00> : vector<2x128xf32>
    %219 = tpu.matmul %217, %177, %cst_75 {dimension_numbers = #tpu.dot_dimension_numbers<[1], [0], [0], [1], [0, 0, 1, 1], [], []>} : vector<2x32xf32>, vector<32x128xf32>, vector<2x128xf32> -> vector<2x128xf32>
    %220 = arith.addf %218, %219 : vector<2x128xf32>
    %221 = vector.extract_strided_slice %220 {offsets = [0, 0], sizes = [2, 96], strides = [1, 1]} : vector<2x128xf32> to vector<2x96xf32>
    %222 = arith.negf %221 : vector<2x96xf32>
    %223 = math.exp %222 : vector<2x96xf32>
    %cst_76 = arith.constant 1.000000e+00 : f32
    %224 = vector.broadcast %cst_76 : f32 to vector<2x96xf32>
    %225 = arith.addf %224, %223 : vector<2x96xf32>
    %226 = arith.divf %224, %225 : vector<2x96xf32>
    %227 = vector.extract_strided_slice %220 {offsets = [0, 96], sizes = [2, 32], strides = [1, 1]} : vector<2x128xf32> to vector<2x32xf32>
    %228 = math.tanh %227 : vector<2x32xf32>
    %229 = vector.extract_strided_slice %226 {offsets = [0, 0], sizes = [2, 32], strides = [1, 1]} : vector<2x96xf32> to vector<2x32xf32>
    %230 = vector.extract_strided_slice %226 {offsets = [0, 32], sizes = [2, 32], strides = [1, 1]} : vector<2x96xf32> to vector<2x32xf32>
    %231 = vector.extract_strided_slice %226 {offsets = [0, 64], sizes = [2, 32], strides = [1, 1]} : vector<2x96xf32> to vector<2x32xf32>
    %232 = arith.mulf %230, %215 : vector<2x32xf32>
    %233 = arith.mulf %229, %228 : vector<2x32xf32>
    %234 = arith.addf %232, %233 : vector<2x32xf32>
    %235 = math.tanh %234 : vector<2x32xf32>
    %236 = arith.mulf %231, %235 : vector<2x32xf32>
    %c6_77 = arith.constant 6 : index
    %c0_78 = arith.constant 0 : index
    %237 = vector.load %arg14[%c6_77, %c0_78] : memref<16x128xf32, #tpu.memory_space<vmem>>, vector<2x128xf32>
    %cst_79 = arith.constant dense<0.000000e+00> : vector<2x128xf32>
    %238 = tpu.matmul %236, %177, %cst_79 {dimension_numbers = #tpu.dot_dimension_numbers<[1], [0], [0], [1], [0, 0, 1, 1], [], []>} : vector<2x32xf32>, vector<32x128xf32>, vector<2x128xf32> -> vector<2x128xf32>
    %239 = arith.addf %237, %238 : vector<2x128xf32>
    %240 = vector.extract_strided_slice %239 {offsets = [0, 0], sizes = [2, 96], strides = [1, 1]} : vector<2x128xf32> to vector<2x96xf32>
    %241 = arith.negf %240 : vector<2x96xf32>
    %242 = math.exp %241 : vector<2x96xf32>
    %cst_80 = arith.constant 1.000000e+00 : f32
    %243 = vector.broadcast %cst_80 : f32 to vector<2x96xf32>
    %244 = arith.addf %243, %242 : vector<2x96xf32>
    %245 = arith.divf %243, %244 : vector<2x96xf32>
    %246 = vector.extract_strided_slice %239 {offsets = [0, 96], sizes = [2, 32], strides = [1, 1]} : vector<2x128xf32> to vector<2x32xf32>
    %247 = math.tanh %246 : vector<2x32xf32>
    %248 = vector.extract_strided_slice %245 {offsets = [0, 0], sizes = [2, 32], strides = [1, 1]} : vector<2x96xf32> to vector<2x32xf32>
    %249 = vector.extract_strided_slice %245 {offsets = [0, 32], sizes = [2, 32], strides = [1, 1]} : vector<2x96xf32> to vector<2x32xf32>
    %250 = vector.extract_strided_slice %245 {offsets = [0, 64], sizes = [2, 32], strides = [1, 1]} : vector<2x96xf32> to vector<2x32xf32>
    %251 = arith.mulf %249, %234 : vector<2x32xf32>
    %252 = arith.mulf %248, %247 : vector<2x32xf32>
    %253 = arith.addf %251, %252 : vector<2x32xf32>
    %254 = math.tanh %253 : vector<2x32xf32>
    %255 = arith.mulf %250, %254 : vector<2x32xf32>
    %c8_81 = arith.constant 8 : index
    %c0_82 = arith.constant 0 : index
    %256 = vector.load %arg14[%c8_81, %c0_82] : memref<16x128xf32, #tpu.memory_space<vmem>>, vector<2x128xf32>
    %cst_83 = arith.constant dense<0.000000e+00> : vector<2x128xf32>
    %257 = tpu.matmul %255, %177, %cst_83 {dimension_numbers = #tpu.dot_dimension_numbers<[1], [0], [0], [1], [0, 0, 1, 1], [], []>} : vector<2x32xf32>, vector<32x128xf32>, vector<2x128xf32> -> vector<2x128xf32>
    %258 = arith.addf %256, %257 : vector<2x128xf32>
    %259 = vector.extract_strided_slice %258 {offsets = [0, 0], sizes = [2, 96], strides = [1, 1]} : vector<2x128xf32> to vector<2x96xf32>
    %260 = arith.negf %259 : vector<2x96xf32>
    %261 = math.exp %260 : vector<2x96xf32>
    %cst_84 = arith.constant 1.000000e+00 : f32
    %262 = vector.broadcast %cst_84 : f32 to vector<2x96xf32>
    %263 = arith.addf %262, %261 : vector<2x96xf32>
    %264 = arith.divf %262, %263 : vector<2x96xf32>
    %265 = vector.extract_strided_slice %258 {offsets = [0, 96], sizes = [2, 32], strides = [1, 1]} : vector<2x128xf32> to vector<2x32xf32>
    %266 = math.tanh %265 : vector<2x32xf32>
    %267 = vector.extract_strided_slice %264 {offsets = [0, 0], sizes = [2, 32], strides = [1, 1]} : vector<2x96xf32> to vector<2x32xf32>
    %268 = vector.extract_strided_slice %264 {offsets = [0, 32], sizes = [2, 32], strides = [1, 1]} : vector<2x96xf32> to vector<2x32xf32>
    %269 = vector.extract_strided_slice %264 {offsets = [0, 64], sizes = [2, 32], strides = [1, 1]} : vector<2x96xf32> to vector<2x32xf32>
    %270 = arith.mulf %268, %253 : vector<2x32xf32>
    %271 = arith.mulf %267, %266 : vector<2x32xf32>
    %272 = arith.addf %270, %271 : vector<2x32xf32>
    %273 = math.tanh %272 : vector<2x32xf32>
    %274 = arith.mulf %269, %273 : vector<2x32xf32>
    %c10_85 = arith.constant 10 : index
    %c0_86 = arith.constant 0 : index
    %275 = vector.load %arg14[%c10_85, %c0_86] : memref<16x128xf32, #tpu.memory_space<vmem>>, vector<2x128xf32>
    %cst_87 = arith.constant dense<0.000000e+00> : vector<2x128xf32>
    %276 = tpu.matmul %274, %177, %cst_87 {dimension_numbers = #tpu.dot_dimension_numbers<[1], [0], [0], [1], [0, 0, 1, 1], [], []>} : vector<2x32xf32>, vector<32x128xf32>, vector<2x128xf32> -> vector<2x128xf32>
    %277 = arith.addf %275, %276 : vector<2x128xf32>
    %278 = vector.extract_strided_slice %277 {offsets = [0, 0], sizes = [2, 96], strides = [1, 1]} : vector<2x128xf32> to vector<2x96xf32>
    %279 = arith.negf %278 : vector<2x96xf32>
    %280 = math.exp %279 : vector<2x96xf32>
    %cst_88 = arith.constant 1.000000e+00 : f32
    %281 = vector.broadcast %cst_88 : f32 to vector<2x96xf32>
    %282 = arith.addf %281, %280 : vector<2x96xf32>
    %283 = arith.divf %281, %282 : vector<2x96xf32>
    %284 = vector.extract_strided_slice %277 {offsets = [0, 96], sizes = [2, 32], strides = [1, 1]} : vector<2x128xf32> to vector<2x32xf32>
    %285 = math.tanh %284 : vector<2x32xf32>
    %286 = vector.extract_strided_slice %283 {offsets = [0, 0], sizes = [2, 32], strides = [1, 1]} : vector<2x96xf32> to vector<2x32xf32>
    %287 = vector.extract_strided_slice %283 {offsets = [0, 32], sizes = [2, 32], strides = [1, 1]} : vector<2x96xf32> to vector<2x32xf32>
    %288 = vector.extract_strided_slice %283 {offsets = [0, 64], sizes = [2, 32], strides = [1, 1]} : vector<2x96xf32> to vector<2x32xf32>
    %289 = arith.mulf %287, %272 : vector<2x32xf32>
    %290 = arith.mulf %286, %285 : vector<2x32xf32>
    %291 = arith.addf %289, %290 : vector<2x32xf32>
    %292 = math.tanh %291 : vector<2x32xf32>
    %293 = arith.mulf %288, %292 : vector<2x32xf32>
    %c12_89 = arith.constant 12 : index
    %c0_90 = arith.constant 0 : index
    %294 = vector.load %arg14[%c12_89, %c0_90] : memref<16x128xf32, #tpu.memory_space<vmem>>, vector<2x128xf32>
    %cst_91 = arith.constant dense<0.000000e+00> : vector<2x128xf32>
    %295 = tpu.matmul %293, %177, %cst_91 {dimension_numbers = #tpu.dot_dimension_numbers<[1], [0], [0], [1], [0, 0, 1, 1], [], []>} : vector<2x32xf32>, vector<32x128xf32>, vector<2x128xf32> -> vector<2x128xf32>
    %296 = arith.addf %294, %295 : vector<2x128xf32>
    %297 = vector.extract_strided_slice %296 {offsets = [0, 0], sizes = [2, 96], strides = [1, 1]} : vector<2x128xf32> to vector<2x96xf32>
    %298 = arith.negf %297 : vector<2x96xf32>
    %299 = math.exp %298 : vector<2x96xf32>
    %cst_92 = arith.constant 1.000000e+00 : f32
    %300 = vector.broadcast %cst_92 : f32 to vector<2x96xf32>
    %301 = arith.addf %300, %299 : vector<2x96xf32>
    %302 = arith.divf %300, %301 : vector<2x96xf32>
    %303 = vector.extract_strided_slice %296 {offsets = [0, 96], sizes = [2, 32], strides = [1, 1]} : vector<2x128xf32> to vector<2x32xf32>
    %304 = math.tanh %303 : vector<2x32xf32>
    %305 = vector.extract_strided_slice %302 {offsets = [0, 0], sizes = [2, 32], strides = [1, 1]} : vector<2x96xf32> to vector<2x32xf32>
    %306 = vector.extract_strided_slice %302 {offsets = [0, 32], sizes = [2, 32], strides = [1, 1]} : vector<2x96xf32> to vector<2x32xf32>
    %307 = vector.extract_strided_slice %302 {offsets = [0, 64], sizes = [2, 32], strides = [1, 1]} : vector<2x96xf32> to vector<2x32xf32>
    %308 = arith.mulf %306, %291 : vector<2x32xf32>
    %309 = arith.mulf %305, %304 : vector<2x32xf32>
    %310 = arith.addf %308, %309 : vector<2x32xf32>
    %311 = math.tanh %310 : vector<2x32xf32>
    %312 = arith.mulf %307, %311 : vector<2x32xf32>
    %c14_93 = arith.constant 14 : index
    %c0_94 = arith.constant 0 : index
    %313 = vector.load %arg14[%c14_93, %c0_94] : memref<16x128xf32, #tpu.memory_space<vmem>>, vector<2x128xf32>
    %cst_95 = arith.constant dense<0.000000e+00> : vector<2x128xf32>
    %314 = tpu.matmul %312, %177, %cst_95 {dimension_numbers = #tpu.dot_dimension_numbers<[1], [0], [0], [1], [0, 0, 1, 1], [], []>} : vector<2x32xf32>, vector<32x128xf32>, vector<2x128xf32> -> vector<2x128xf32>
    %315 = arith.addf %313, %314 : vector<2x128xf32>
    %316 = vector.extract_strided_slice %315 {offsets = [0, 0], sizes = [2, 96], strides = [1, 1]} : vector<2x128xf32> to vector<2x96xf32>
    %317 = arith.negf %316 : vector<2x96xf32>
    %318 = math.exp %317 : vector<2x96xf32>
    %cst_96 = arith.constant 1.000000e+00 : f32
    %319 = vector.broadcast %cst_96 : f32 to vector<2x96xf32>
    %320 = arith.addf %319, %318 : vector<2x96xf32>
    %321 = arith.divf %319, %320 : vector<2x96xf32>
    %322 = vector.extract_strided_slice %315 {offsets = [0, 96], sizes = [2, 32], strides = [1, 1]} : vector<2x128xf32> to vector<2x32xf32>
    %323 = math.tanh %322 : vector<2x32xf32>
    %324 = vector.extract_strided_slice %321 {offsets = [0, 0], sizes = [2, 32], strides = [1, 1]} : vector<2x96xf32> to vector<2x32xf32>
    %325 = vector.extract_strided_slice %321 {offsets = [0, 32], sizes = [2, 32], strides = [1, 1]} : vector<2x96xf32> to vector<2x32xf32>
    %326 = vector.extract_strided_slice %321 {offsets = [0, 64], sizes = [2, 32], strides = [1, 1]} : vector<2x96xf32> to vector<2x32xf32>
    %327 = arith.mulf %325, %310 : vector<2x32xf32>
    %328 = arith.mulf %324, %323 : vector<2x32xf32>
    %329 = arith.addf %327, %328 : vector<2x32xf32>
    %330 = math.tanh %329 : vector<2x32xf32>
    %331 = arith.mulf %326, %330 : vector<2x32xf32>
    %cst_97 = arith.constant dense<0.000000e+00> : vector<2xf32>
    %332 = vector.multi_reduction <add>, %331, %cst_97 [1] : vector<2x32xf32> to vector<2xf32>
    %333 = vector.shape_cast %332 : vector<2xf32> to vector<2x1xf32>
    %cst_98 = arith.constant 3.200000e+01 : f32
    %334 = vector.broadcast %cst_98 : f32 to vector<2x1xf32>
    %335 = arith.divf %333, %334 : vector<2x1xf32>
    %336 = vector.broadcast %335 : vector<2x1xf32> to vector<2x32xf32>
    %337 = arith.subf %331, %336 : vector<2x32xf32>
    %338 = arith.mulf %337, %337 : vector<2x32xf32>
    %cst_99 = arith.constant dense<0.000000e+00> : vector<2xf32>
    %339 = vector.multi_reduction <add>, %338, %cst_99 [1] : vector<2x32xf32> to vector<2xf32>
    %340 = vector.shape_cast %339 : vector<2xf32> to vector<2x1xf32>
    %cst_100 = arith.constant 3.200000e+01 : f32
    %341 = vector.broadcast %cst_100 : f32 to vector<2x1xf32>
    %342 = arith.divf %340, %341 : vector<2x1xf32>
    %343 = vector.broadcast %335 : vector<2x1xf32> to vector<2x32xf32>
    %344 = arith.subf %331, %343 : vector<2x32xf32>
    %cst_101 = arith.constant 9.99999974E-6 : f32
    %345 = vector.broadcast %cst_101 : f32 to vector<2x1xf32>
    %346 = arith.addf %342, %345 : vector<2x1xf32>
    %347 = math.rsqrt %346 : vector<2x1xf32>
    %348 = vector.broadcast %347 : vector<2x1xf32> to vector<2x32xf32>
    %349 = arith.mulf %344, %348 : vector<2x32xf32>
    %c0_102 = arith.constant 0 : index
    %c0_103 = arith.constant 0 : index
    %350 = vector.load %arg8[%c0_102, %c0_103] : memref<1x32xf32, #tpu.memory_space<vmem>>, vector<1x32xf32>
    %351 = vector.broadcast %350 : vector<1x32xf32> to vector<2x32xf32>
    %352 = arith.mulf %349, %351 : vector<2x32xf32>
    %c0_104 = arith.constant 0 : index
    %c0_105 = arith.constant 0 : index
    %353 = vector.load %arg9[%c0_104, %c0_105] : memref<1x32xf32, #tpu.memory_space<vmem>>, vector<1x32xf32>
    %354 = vector.broadcast %353 : vector<1x32xf32> to vector<2x32xf32>
    %355 = arith.addf %352, %354 : vector<2x32xf32>
    %c0_106 = arith.constant 0 : index
    %c0_107 = arith.constant 0 : index
    %356 = vector.load %arg10[%c0_106, %c0_107] : memref<32x4xf32, #tpu.memory_space<vmem>>, vector<32x4xf32>
    %cst_108 = arith.constant dense<0.000000e+00> : vector<2x4xf32>
    %357 = tpu.matmul %355, %356, %cst_108 {dimension_numbers = #tpu.dot_dimension_numbers<[1], [0], [0], [1], [0, 0, 1, 1], [], []>} : vector<2x32xf32>, vector<32x4xf32>, vector<2x4xf32> -> vector<2x4xf32>
    %c0_109 = arith.constant 0 : index
    %c0_110 = arith.constant 0 : index
    %358 = vector.load %arg11[%c0_109, %c0_110] : memref<1x4xf32, #tpu.memory_space<vmem>>, vector<1x4xf32>
    %359 = vector.broadcast %358 : vector<1x4xf32> to vector<2x4xf32>
    %360 = arith.addf %357, %359 : vector<2x4xf32>
    %cst_111 = arith.constant dense<0xFF800000> : vector<2xf32>
    %361 = vector.multi_reduction <maximumf>, %360, %cst_111 [1] : vector<2x4xf32> to vector<2xf32>
    %362 = vector.shape_cast %361 : vector<2xf32> to vector<2x1xf32>
    %363 = vector.broadcast %362 : vector<2x1xf32> to vector<2x4xf32>
    %364 = arith.subf %360, %363 : vector<2x4xf32>
    %365 = math.exp %364 : vector<2x4xf32>
    %cst_112 = arith.constant dense<0.000000e+00> : vector<2xf32>
    %366 = vector.multi_reduction <add>, %365, %cst_112 [1] : vector<2x4xf32> to vector<2xf32>
    %367 = vector.shape_cast %366 : vector<2xf32> to vector<2x1xf32>
    %368 = math.log %367 : vector<2x1xf32>
    %369 = arith.addf %368, %362 : vector<2x1xf32>
    %370 = vector.broadcast %369 : vector<2x1xf32> to vector<2x4xf32>
    %371 = arith.subf %360, %370 : vector<2x4xf32>
    %c0_113 = arith.constant 0 : index
    %c0_114 = arith.constant 0 : index
    %372 = vector.load %arg12[%c0_113, %c0_114] : memref<2x4xf32, #tpu.memory_space<vmem>>, vector<2x4xf32>
    tpu.vector_store %arg12[%c0_113, %c0_114], %371 {strides = array<i32>} : memref<2x4xf32, #tpu.memory_space<vmem>>, vector<2x4xf32>,
    return
  }
  func.func @transform_0(%arg0: i32) -> (i32, i32) {
    %c0_i32 = arith.constant 0 : i32
    %c0_i32_0 = arith.constant 0 : i32
    %c0_i32_1 = arith.constant 0 : i32
    return %c0_i32, %c0_i32_0 : i32, i32
  }
  func.func @transform_1(%arg0: i32) -> (i32, i32) {
    %c0_i32 = arith.constant 0 : i32
    %c0_i32_0 = arith.constant 0 : i32
    %c0_i32_1 = arith.constant 0 : i32
    return %c0_i32, %c0_i32_0 : i32, i32
  }
  func.func @transform_2(%arg0: i32) -> (i32, i32) {
    %c0_i32 = arith.constant 0 : i32
    %c0_i32_0 = arith.constant 0 : i32
    %c0_i32_1 = arith.constant 0 : i32
    return %c0_i32, %c0_i32_0 : i32, i32
  }
  func.func @transform_3(%arg0: i32) -> (i32, i32) {
    %c0_i32 = arith.constant 0 : i32
    %c0_i32_0 = arith.constant 0 : i32
    %c0_i32_1 = arith.constant 0 : i32
    return %c0_i32, %c0_i32_0 : i32, i32
  }
  func.func @transform_4(%arg0: i32) -> (i32, i32) {
    %c0_i32 = arith.constant 0 : i32
    %c0_i32_0 = arith.constant 0 : i32
    %c0_i32_1 = arith.constant 0 : i32
    return %c0_i32, %c0_i32_0 : i32, i32
  }
  func.func @transform_5(%arg0: i32) -> (i32, i32) {
    %c0_i32 = arith.constant 0 : i32
    %c0_i32_0 = arith.constant 0 : i32
    %c0_i32_1 = arith.constant 0 : i32
    return %c0_i32, %c0_i32_0 : i32, i32
  }
  func.func @transform_6(%arg0: i32) -> (i32, i32) {
    %c0_i32 = arith.constant 0 : i32
    %c0_i32_0 = arith.constant 0 : i32
    %c0_i32_1 = arith.constant 0 : i32
    return %c0_i32, %c0_i32_0 : i32, i32
  }
  func.func @transform_7(%arg0: i32) -> (i32, i32) {
    %c0_i32 = arith.constant 0 : i32
    %c0_i32_0 = arith.constant 0 : i32
    %c0_i32_1 = arith.constant 0 : i32
    return %c0_i32, %c0_i32_0 : i32, i32
  }
  func.func @transform_8(%arg0: i32) -> (i32, i32) {
    %c0_i32 = arith.constant 0 : i32
    %c0_i32_0 = arith.constant 0 : i32
    %c0_i32_1 = arith.constant 0 : i32
    return %c0_i32, %c0_i32_0 : i32, i32
  }
  func.func @transform_9(%arg0: i32) -> (i32, i32) {
    %c0_i32 = arith.constant 0 : i32
    %c0_i32_0 = arith.constant 0 : i32
    %c0_i32_1 = arith.constant 0 : i32
    return %c0_i32, %c0_i32_0 : i32, i32
  }
  func.func @transform_10(%arg0: i32) -> (i32, i32) {
    %c0_i32 = arith.constant 0 : i32
    %c0_i32_0 = arith.constant 0 : i32
    %c0_i32_1 = arith.constant 0 : i32
    return %c0_i32, %c0_i32_0 : i32, i32
  }
  func.func @transform_11(%arg0: i32) -> (i32, i32) {
    %c0_i32 = arith.constant 0 : i32
    %c0_i32_0 = arith.constant 0 : i32
    %c0_i32_1 = arith.constant 0 : i32
    return %c0_i32, %c0_i32_0 : i32, i32
  }
}

</mosaic_0001>

<llo_original>
// kernel: lstm_model_forward.1
$region0: #{lstm_model_forward.1}
  #allocation0 [shape = 'u32[]', space=smem, size = 0x4, offset = 0x4, fixed_abs, tag = 'smem constant byte address 0x4 - core index']
  #allocation1 [shape = 'u32[144,128]{1,0:T(1,128)}', space=vmem, size = 0x12000, scoped, tag = 'internal scratch']
  #allocation2 [shape = 'f32[16,32]{1,0:T(8,128)}', space=vmem, size = 0x2000, scoped, tag = 'scratch operand']
  #allocation3 [shape = 'f32[16,128]{1,0:T(8,128)}', space=vmem, size = 0x2000, scoped, tag = 'scratch operand']
  %s0 = inlined_call_operand.vmem [shape: f32[16,4], index: 0, kind: input, shape index: {}]
  %s1 = inlined_call_operand.hbm [shape: f32[4,128], index: 1, kind: input, shape index: {}]
  %s2 = inlined_call_operand.vmem [shape: f32[32,128], index: 2, kind: input, shape index: {}]
  %s3 = inlined_call_operand.vmem [shape: f32[1,128], index: 3, kind: input, shape index: {}]
  %s4 = inlined_call_operand.vmem [shape: f32[32,128], index: 4, kind: input, shape index: {}]
  %s5 = inlined_call_operand.vmem [shape: f32[32,128], index: 5, kind: input, shape index: {}]
  %s6 = inlined_call_operand.hbm [shape: f32[1,128], index: 6, kind: input, shape index: {}]
  %s7 = inlined_call_operand.hbm [shape: f32[1,32], index: 7, kind: input, shape index: {}]
  %s8 = inlined_call_operand.hbm [shape: f32[1,32], index: 8, kind: input, shape index: {}]
  %s9 = inlined_call_operand.vmem [shape: f32[32,4], index: 9, kind: input, shape index: {}]
  %s10 = inlined_call_operand.hbm [shape: f32[1,4], index: 10, kind: input, shape index: {}]
  %s11 = inlined_call_operand.hbm [shape: f32[2,4], index: 11, kind: output, shape index: {}]
  %s12 = sld [smem:[#allocation0]]
  $region74: #{lstm_model_forward.1} parent=0
    _
  %s14 = ssub.s32 1, %s12
  %s15 = scalar_select 0, %s14, %s12
  $region1: #{lstm_model_forward.1} parent=0
    #allocation4 [shape = 'u8[2048]{0}', space=vmem, size = 0x800, scoped, tag = 'input window, operand 1, single buffered']
    #allocation5 [shape = 's32[1]{0}', space=sflag, size = 0x4, scoped, tag = 'scoped memory for lstm_model_forward.1']
    #allocation6 [shape = 's32[1]{0}', space=sflag, size = 0x4, scoped, tag = 'scoped memory for lstm_model_forward.1']
    #allocation7 [shape = 'u8[512]{0}', space=vmem, size = 0x400, scoped, tag = 'input window, operand 6, single buffered']
    #allocation8 [shape = 's32[1]{0}', space=sflag, size = 0x4, scoped, tag = 'scoped memory for lstm_model_forward.1']
    #allocation9 [shape = 'u8[512]{0}', space=vmem, size = 0x400, scoped, tag = 'input window, operand 7, single buffered']
    #allocation10 [shape = 'u8[512]{0}', space=vmem, size = 0x400, scoped, tag = 'input window, operand 8, single buffered']
    #allocation11 [shape = 's32[1]{0}', space=sflag, size = 0x4, scoped, tag = 'scoped memory for lstm_model_forward.1']
    #allocation12 [shape = 'u8[512]{0}', space=vmem, size = 0x400, scoped, tag = 'input window, operand 10, single buffered']
    #allocation13 [shape = 'u8[1024]{0}', space=vmem, size = 0x400, scoped, tag = 'output window, operand 0, single buffered']
    %16 = vsyncpa [#allocation5], 0
    %17 = vsyncpa [#allocation8], 0
    %18 = vsyncpa [#allocation11], 0
    %19 = vsyncpa [#allocation6], 0
    // Predicated region
    $region2: #{lstm_model_forward.1} parent=1 // pred_check
      _
    $region3: #{lstm_model_forward.1} parent=1 // pred_check_branch
      %21 = sbr.rel (0) target = $region5
    $region4: #{lstm_model_forward.1} parent=1 // pred_region
      _
    $region5: #{lstm_model_forward.1} parent=1 // pred_fallthru
      _
    // Predicated region
    $region6: #{lstm_model_forward.1} parent=1 // pred_check
      _
    $region7: #{lstm_model_forward.1} parent=1 // pred_check_branch
      %23 = sbr.rel (0) target = $region9
    $region8: #{lstm_model_forward.1} parent=1 // pred_region
      %s25 = ssub.s32 64, 64
      %26 = vsyncadd [#allocation5], %s25
      %s28 = sshll.u32 [#allocation4], 4
      %s29 = int_to_ptr.vmem [resolvable:$true] %s28
      %31 = dma.hbm_to_vmem [thread:$0]  %s1, 64, %s29, [#allocation5]
    $region9: #{lstm_model_forward.1} parent=1 // pred_fallthru
      _
    // Predicated region
    $region10: #{lstm_model_forward.1} parent=1 // pred_check
      _
    $region11: #{lstm_model_forward.1} parent=1 // pred_check_branch
      %33 = sbr.rel (0) target = $region13
    $region12: #{lstm_model_forward.1} parent=1 // pred_region
      _
    $region13: #{lstm_model_forward.1} parent=1 // pred_fallthru
      _
    // Predicated region
    $region14: #{lstm_model_forward.1} parent=1 // pred_check
      _
    $region15: #{lstm_model_forward.1} parent=1 // pred_check_branch
      %35 = sbr.rel (0) target = $region17
    $region16: #{lstm_model_forward.1} parent=1 // pred_region
      _
    $region17: #{lstm_model_forward.1} parent=1 // pred_fallthru
      _
    // Predicated region
    $region18: #{lstm_model_forward.1} parent=1 // pred_check
      _
    $region19: #{lstm_model_forward.1} parent=1 // pred_check_branch
      %37 = sbr.rel (0) target = $region21
    $region20: #{lstm_model_forward.1} parent=1 // pred_region
      _
    $region21: #{lstm_model_forward.1} parent=1 // pred_fallthru
      _
    // Predicated region
    $region22: #{lstm_model_forward.1} parent=1 // pred_check
      _
    $region23: #{lstm_model_forward.1} parent=1 // pred_check_branch
      %39 = sbr.rel (0) target = $region25
    $region24: #{lstm_model_forward.1} parent=1 // pred_region
      _
    $region25: #{lstm_model_forward.1} parent=1 // pred_fallthru
      _
    // Predicated region
    $region26: #{lstm_model_forward.1} parent=1 // pred_check
      _
    $region27: #{lstm_model_forward.1} parent=1 // pred_check_branch
      %41 = sbr.rel (0) target = $region29
    $region28: #{lstm_model_forward.1} parent=1 // pred_region
      %s43 = ssub.s32 16, 16
      %44 = vsyncadd [#allocation8], %s43
      %s46 = sshll.u32 [#allocation7], 4
      %s47 = int_to_ptr.vmem [resolvable:$true] %s46
      %49 = dma.hbm_to_vmem [thread:$0]  %s6, 16, %s47, [#allocation8]
    $region29: #{lstm_model_forward.1} parent=1 // pred_fallthru
      _
    // Predicated region
    $region30: #{lstm_model_forward.1} parent=1 // pred_check
      _
    $region31: #{lstm_model_forward.1} parent=1 // pred_check_branch
      %51 = sbr.rel (0) target = $region33
    $region32: #{lstm_model_forward.1} parent=1 // pred_region
      %s53 = ssub.s32 16, 16
      %54 = vsyncadd [#allocation8], %s53
      %s56 = sshll.u32 [#allocation9], 4
      %s57 = int_to_ptr.vmem [resolvable:$true] %s56
      %59 = dma.hbm_to_vmem [thread:$0]  %s7, 16, %s57, [#allocation8]
    $region33: #{lstm_model_forward.1} parent=1 // pred_fallthru
      _
    // Predicated region
    $region34: #{lstm_model_forward.1} parent=1 // pred_check
      _
    $region35: #{lstm_model_forward.1} parent=1 // pred_check_branch
      %61 = sbr.rel (0) target = $region37
    $region36: #{lstm_model_forward.1} parent=1 // pred_region
      %s63 = ssub.s32 16, 16
      %64 = vsyncadd [#allocation11], %s63
      %s66 = sshll.u32 [#allocation10], 4
      %s67 = int_to_ptr.vmem [resolvable:$true] %s66
      %69 = dma.hbm_to_vmem [thread:$0]  %s8, 16, %s67, [#allocation11]
    $region37: #{lstm_model_forward.1} parent=1 // pred_fallthru
      _
    // Predicated region
    $region38: #{lstm_model_forward.1} parent=1 // pred_check
      _
    $region39: #{lstm_model_forward.1} parent=1 // pred_check_branch
      %71 = sbr.rel (0) target = $region41
    $region40: #{lstm_model_forward.1} parent=1 // pred_region
      _
    $region41: #{lstm_model_forward.1} parent=1 // pred_fallthru
      _
    // Predicated region
    $region42: #{lstm_model_forward.1} parent=1 // pred_check
      _
    $region43: #{lstm_model_forward.1} parent=1 // pred_check_branch
      %73 = sbr.rel (0) target = $region45
    $region44: #{lstm_model_forward.1} parent=1 // pred_region
      %s75 = ssub.s32 16, 16
      %76 = vsyncadd [#allocation11], %s75
      %s78 = sshll.u32 [#allocation12], 4
      %s79 = int_to_ptr.vmem [resolvable:$true] %s78
      %81 = dma.hbm_to_vmem [thread:$0]  %s10, 16, %s79, [#allocation11]
    $region45: #{lstm_model_forward.1} parent=1 // pred_fallthru
      _
    // Predicated region
    $region46: #{lstm_model_forward.1} parent=1 // pred_check
      _
    $region47: #{lstm_model_forward.1} parent=1 // pred_check_branch
      %83 = sbr.rel (0) target = $region49
    $region48: #{lstm_model_forward.1} parent=1 // pred_region
      %84 = dma.done [#allocation5], 64
    $region49: #{lstm_model_forward.1} parent=1 // pred_fallthru
      _
    // Predicated region
    $region50: #{lstm_model_forward.1} parent=1 // pred_check
      _
    $region51: #{lstm_model_forward.1} parent=1 // pred_check_branch
      %86 = sbr.rel (0) target = $region53
    $region52: #{lstm_model_forward.1} parent=1 // pred_region
      %87 = dma.done [#allocation8], 16
    $region53: #{lstm_model_forward.1} parent=1 // pred_fallthru
      _
    // Predicated region
    $region54: #{lstm_model_forward.1} parent=1 // pred_check
      _
    $region55: #{lstm_model_forward.1} parent=1 // pred_check_branch
      %89 = sbr.rel (0) target = $region57
    $region56: #{lstm_model_forward.1} parent=1 // pred_region
      %90 = dma.done [#allocation8], 16
    $region57: #{lstm_model_forward.1} parent=1 // pred_fallthru
      _
    // Predicated region
    $region58: #{lstm_model_forward.1} parent=1 // pred_check
      _
    $region59: #{lstm_model_forward.1} parent=1 // pred_check_branch
      %92 = sbr.rel (0) target = $region61
    $region60: #{lstm_model_forward.1} parent=1 // pred_region
      %93 = dma.done [#allocation11], 16
    $region61: #{lstm_model_forward.1} parent=1 // pred_fallthru
      _
    // Predicated region
    $region62: #{lstm_model_forward.1} parent=1 // pred_check
      _
    $region63: #{lstm_model_forward.1} parent=1 // pred_check_branch
      %95 = sbr.rel (0) target = $region65
    $region64: #{lstm_model_forward.1} parent=1 // pred_region
      %96 = dma.done [#allocation11], 16
    $region65: #{lstm_model_forward.1} parent=1 // pred_fallthru
      _
    %v97 = vld [vmem:[%s0] sm:$0xff]
    %v98 = vld [vmem:[%s0 + $0x8] sm:$0xff]
    %v99 = vld [vmem:[#allocation4] sm:$0xf]
    %v100 = vld [vmem:[%s3] sm:$0x1]
    %v102 = vlaneseq
    %v103 = vshrl.u32 %v102, 7
    %v104 = vsub.s32 0, %v103
    %v105 = vrot.slane %v100, %v104
    %vm107 = vcmask 31744
    %v109 = vsel %vm107, %v97, 0
    %v112 = vsel %vm107, %v98, 0
    %vm114 = vcmask 1043456
    %v116 = vsel %vm114, %v99, 0
    %118 = vmatprep.subr.mxu0 0.0
    %119 = vmatpush1.msra.mxu0 %v116
    %120 = vmatprep.subr.mxu0 0.0
    %121 = vmatpush1.msra.mxu0 0.0
    %122 = vmatprep.subr.mxu0 0.0
    %123 = vmatpush1.msra.mxu0 0.0
    %124 = vmatprep.subr.mxu0 0.0
    %125 = vmatpush1.msra.mxu0 0.0
    %126 = vmatprep.subr.mxu0 0.0
    %127 = vmatpush1.msra.mxu0 0.0
    %128 = vmatprep.subr.mxu0 0.0
    %129 = vmatpush1.msra.mxu0 0.0
    %130 = vmatprep.subr.mxu0 0.0
    %131 = vmatpush1.msra.mxu0 0.0
    %132 = vmatprep.subr.mxu0 0.0
    %133 = vmatpush1.msra.mxu0 0.0
    %134 = vmatprep.subr.mxu0 0.0
    %135 = vmatpush1.msra.mxu0 0.0
    %136 = vmatprep.subr.mxu0 0.0
    %137 = vmatpush1.msra.mxu0 0.0
    %138 = vmatprep.subr.mxu0 0.0
    %139 = vmatpush1.msra.mxu0 0.0
    %140 = vmatprep.subr.mxu0 0.0
    %141 = vmatpush1.msra.mxu0 0.0
    %142 = vmatprep.subr.mxu0 0.0
    %143 = vmatpush1.msra.mxu0 0.0
    %144 = vmatprep.subr.mxu0 0.0
    %145 = vmatpush1.msra.mxu0 0.0
    %146 = vmatprep.subr.mxu0 0.0
    %147 = vmatpush1.msra.mxu0 0.0
    %148 = vmatprep.subr.mxu0 0.0
    %149 = vmatpush1.msra.mxu0 0.0
    %150 = vmatprep.subr.mxu0 0.0
    %151 = vmatpush1.msra.mxu0 0.0
    %152 = vmatprep.subr.mxu0 0.0
    %153 = vmatpush1.msra.mxu0 0.0
    %154 = vmatprep.subr.mxu0 0.0
    %155 = vmatpush1.msra.mxu0 0.0
    %156 = vmatprep.subr.mxu0 0.0
    %157 = vmatpush1.msra.mxu0 0.0
    %158 = vmatprep.subr.mxu0 0.0
    %159 = vmatpush1.msra.mxu0 0.0
    %160 = vmatprep.subr.mxu0 0.0
    %161 = vmatpush1.msra.mxu0 0.0
    %162 = vmatprep.subr.mxu0 0.0
    %163 = vmatpush1.msra.mxu0 0.0
    %164 = vmatprep.subr.mxu0 0.0
    %165 = vmatpush1.msra.mxu0 0.0
    %166 = vmatprep.subr.mxu0 0.0
    %167 = vmatpush1.msra.mxu0 0.0
    %168 = vmatprep.subr.mxu0 0.0
    %169 = vmatpush1.msra.mxu0 0.0
    %170 = vmatprep.subr.mxu0 0.0
    %171 = vmatpush1.msra.mxu0 0.0
    %172 = vmatprep.subr.mxu0 0.0
    %173 = vmatpush1.msra.mxu0 0.0
    %174 = vmatprep.subr.mxu0 0.0
    %175 = vmatpush1.msra.mxu0 0.0
    %176 = vmatprep.subr.mxu0 0.0
    %177 = vmatpush1.msra.mxu0 0.0
    %178 = vmatprep.subr.mxu0 0.0
    %179 = vmatpush1.msra.mxu0 0.0
    %180 = vmatprep.subr.mxu0 0.0
    %181 = vmatpush1.msra.mxu0 0.0
    %182 = vmatprep.mubr.f32.mxu0 0.0
    %183 = vmatmul.mubr.f32.gmra.mrb[0].mxu0 %v109
    %v184 = vpop.f32.mrb[0].mxu0
    %v185 = vadd.f32 %v105, %v184
    %v186 = vpop.f32.mrb[0].mxu0
    %187 = vmatprep.mubr.f32.mxu0 0.0
    %188 = vmatmul.mubr.f32.gmra.mrb[0].mxu0 %v112
    %v189 = vpop.f32.mrb[0].mxu0
    %v190 = vadd.f32 %v105, %v189
    %v191 = vpop.f32.mrb[0].mxu0
    %192 = vdwg.mxu0
    %193 = vst [vmem:[#allocation3] sm:$0xff] %v185
    %194 = vst [vmem:[#allocation3 + $0x8] sm:$0xff] %v190
    %v195 = vld [vmem:[%s2] sm:$0xff]
    %v196 = vld [vmem:[%s2 + $0x8] sm:$0xff]
    %v197 = vld [vmem:[%s2 + $0x10] sm:$0xff]
    %v198 = vld [vmem:[%s2 + $0x18] sm:$0xff]
    %v199 = vld [vmem:[#allocation3] sm:$0x3]
    %vm200 = vcmask 261120
    %v202 = vsel %vm200, 0.0, 0
    %204 = vmatprep.subr.mxu0 0.0
    %205 = vmatpush1.msra.mxu0 %v195
    %206 = vmatprep.subr.mxu0 0.0
    %207 = vmatpush1.msra.mxu0 %v196
    %208 = vmatprep.subr.mxu0 0.0
    %209 = vmatpush1.msra.mxu0 %v197
    %210 = vmatprep.subr.mxu0 0.0
    %211 = vmatpush1.msra.mxu0 %v198
    %212 = vmatprep.subr.mxu0 0.0
    %213 = vmatpush1.msra.mxu0 0.0
    %214 = vmatprep.subr.mxu0 0.0
    %215 = vmatpush1.msra.mxu0 0.0
    %216 = vmatprep.subr.mxu0 0.0
    %217 = vmatpush1.msra.mxu0 0.0
    %218 = vmatprep.subr.mxu0 0.0
    %219 = vmatpush1.msra.mxu0 0.0
    %220 = vmatprep.subr.mxu0 0.0
    %221 = vmatpush1.msra.mxu0 0.0
    %222 = vmatprep.subr.mxu0 0.0
    %223 = vmatpush1.msra.mxu0 0.0
    %224 = vmatprep.subr.mxu0 0.0
    %225 = vmatpush1.msra.mxu0 0.0
    %226 = vmatprep.subr.mxu0 0.0
    %227 = vmatpush1.msra.mxu0 0.0
    %228 = vmatprep.subr.mxu0 0.0
    %229 = vmatpush1.msra.mxu0 0.0
    %230 = vmatprep.subr.mxu0 0.0
    %231 = vmatpush1.msra.mxu0 0.0
    %232 = vmatprep.subr.mxu0 0.0
    %233 = vmatpush1.msra.mxu0 0.0
    %234 = vmatprep.subr.mxu0 0.0
    %235 = vmatpush1.msra.mxu0 0.0
    %236 = vmatprep.subr.mxu0 0.0
    %237 = vmatpush1.msra.mxu0 0.0
    %238 = vmatprep.subr.mxu0 0.0
    %239 = vmatpush1.msra.mxu0 0.0
    %240 = vmatprep.subr.mxu0 0.0
    %241 = vmatpush1.msra.mxu0 0.0
    %242 = vmatprep.subr.mxu0 0.0
    %243 = vmatpush1.msra.mxu0 0.0
    %244 = vmatprep.subr.mxu0 0.0
    %245 = vmatpush1.msra.mxu0 0.0
    %246 = vmatprep.subr.mxu0 0.0
    %247 = vmatpush1.msra.mxu0 0.0
    %248 = vmatprep.subr.mxu0 0.0
    %249 = vmatpush1.msra.mxu0 0.0
    %250 = vmatprep.subr.mxu0 0.0
    %251 = vmatpush1.msra.mxu0 0.0
    %252 = vmatprep.subr.mxu0 0.0
    %253 = vmatpush1.msra.mxu0 0.0
    %254 = vmatprep.subr.mxu0 0.0
    %255 = vmatpush1.msra.mxu0 0.0
    %256 = vmatprep.subr.mxu0 0.0
    %257 = vmatpush1.msra.mxu0 0.0
    %258 = vmatprep.subr.mxu0 0.0
    %259 = vmatpush1.msra.mxu0 0.0
    %260 = vmatprep.subr.mxu0 0.0
    %261 = vmatpush1.msra.mxu0 0.0
    %262 = vmatprep.subr.mxu0 0.0
    %263 = vmatpush1.msra.mxu0 0.0
    %264 = vmatprep.subr.mxu0 0.0
    %265 = vmatpush1.msra.mxu0 0.0
    %266 = vmatprep.subr.mxu0 0.0
    %267 = vmatpush1.msra.mxu0 0.0
    %268 = vmatprep.mubr.f32.mxu0 0.0
    %269 = vmatmul.mubr.f32.gmra.mrb[0].mxu0 %v202
    %v270 = vpop.f32.mrb[0].mxu0
    %v271 = vadd.f32 0.0, %v270
    %v272 = vpop.f32.mrb[0].mxu0
    %273 = vdwg.mxu0
    %v274 = vadd.f32 %v199, %v271
    %v275 = vxor.u32 %v274, 2147483648
    %v276 = vmul.f32 %v275, 1.442695
    %v277 = vpow.pop %v276
    %v278 = vadd.f32 %v277, 1.0
    %v279 = vrcp.pop %v278
    %v280 = vmul.f32 1.0, %v279
    %v281 = vtanh.pop %v274
    %v282 = vmul.f32 %v280, 0.0
    %284 = vrot.lane.b32.xlu0 %v281, 32
    %v285 = vpop.permute.xlu0 %284
    %v287 = vmul.f32 %v280, %v285
    %289 = vrot.lane.b32.xlu0 %v287, 32
    %v290 = vpop.permute.xlu0 %289
    %v292 = vadd.f32 %v282, %v290
    %v293 = vtanh.pop %v292
    %295 = vrot.lane.b32.xlu0 %v293, 32
    %v296 = vpop.permute.xlu0 %295
    %v298 = vmul.f32 %v280, %v296
    %300 = vrot.lane.b32.xlu0 %v298, 64
    %v301 = vpop.permute.xlu0 %300
    %vm303 = vcmask 254976
    %304 = vst.msk [vmem:[#allocation2] sm:$0x3] %vm303, %v301
    %v305 = vld [vmem:[#allocation3 + $0x2] sm:$0x3]
    %v306 = vsel %vm200, %v301, 0
    %308 = vmatprep.subr.mxu0 0.0
    %309 = vmatpush1.msra.mxu0 %v195
    %310 = vmatprep.subr.mxu0 0.0
    %311 = vmatpush1.msra.mxu0 %v196
    %312 = vmatprep.subr.mxu0 0.0
    %313 = vmatpush1.msra.mxu0 %v197
    %314 = vmatprep.subr.mxu0 0.0
    %315 = vmatpush1.msra.mxu0 %v198
    %316 = vmatprep.subr.mxu0 0.0
    %317 = vmatpush1.msra.mxu0 0.0
    %318 = vmatprep.subr.mxu0 0.0
    %319 = vmatpush1.msra.mxu0 0.0
    %320 = vmatprep.subr.mxu0 0.0
    %321 = vmatpush1.msra.mxu0 0.0
    %322 = vmatprep.subr.mxu0 0.0
    %323 = vmatpush1.msra.mxu0 0.0
    %324 = vmatprep.subr.mxu0 0.0
    %325 = vmatpush1.msra.mxu0 0.0
    %326 = vmatprep.subr.mxu0 0.0
    %327 = vmatpush1.msra.mxu0 0.0
    %328 = vmatprep.subr.mxu0 0.0
    %329 = vmatpush1.msra.mxu0 0.0
    %330 = vmatprep.subr.mxu0 0.0
    %331 = vmatpush1.msra.mxu0 0.0
    %332 = vmatprep.subr.mxu0 0.0
    %333 = vmatpush1.msra.mxu0 0.0
    %334 = vmatprep.subr.mxu0 0.0
    %335 = vmatpush1.msra.mxu0 0.0
    %336 = vmatprep.subr.mxu0 0.0
    %337 = vmatpush1.msra.mxu0 0.0
    %338 = vmatprep.subr.mxu0 0.0
    %339 = vmatpush1.msra.mxu0 0.0
    %340 = vmatprep.subr.mxu0 0.0
    %341 = vmatpush1.msra.mxu0 0.0
    %342 = vmatprep.subr.mxu0 0.0
    %343 = vmatpush1.msra.mxu0 0.0
    %344 = vmatprep.subr.mxu0 0.0
    %345 = vmatpush1.msra.mxu0 0.0
    %346 = vmatprep.subr.mxu0 0.0
    %347 = vmatpush1.msra.mxu0 0.0
    %348 = vmatprep.subr.mxu0 0.0
    %349 = vmatpush1.msra.mxu0 0.0
    %350 = vmatprep.subr.mxu0 0.0
    %351 = vmatpush1.msra.mxu0 0.0
    %352 = vmatprep.subr.mxu0 0.0
    %353 = vmatpush1.msra.mxu0 0.0
    %354 = vmatprep.subr.mxu0 0.0
    %355 = vmatpush1.msra.mxu0 0.0
    %356 = vmatprep.subr.mxu0 0.0
    %357 = vmatpush1.msra.mxu0 0.0
    %358 = vmatprep.subr.mxu0 0.0
    %359 = vmatpush1.msra.mxu0 0.0
    %360 = vmatprep.subr.mxu0 0.0
    %361 = vmatpush1.msra.mxu0 0.0
    %362 = vmatprep.subr.mxu0 0.0
    %363 = vmatpush1.msra.mxu0 0.0
    %364 = vmatprep.subr.mxu0 0.0
    %365 = vmatpush1.msra.mxu0 0.0
    %366 = vmatprep.subr.mxu0 0.0
    %367 = vmatpush1.msra.mxu0 0.0
    %368 = vmatprep.subr.mxu0 0.0
    %369 = vmatpush1.msra.mxu0 0.0
    %370 = vmatprep.subr.mxu0 0.0
    %371 = vmatpush1.msra.mxu0 0.0
    %372 = vmatprep.mubr.f32.mxu0 0.0
    %373 = vmatmul.mubr.f32.gmra.mrb[0].mxu0 %v306
    %v374 = vpop.f32.mrb[0].mxu0
    %v375 = vadd.f32 0.0, %v374
    %v376 = vpop.f32.mrb[0].mxu0
    %377 = vdwg.mxu0
    %v378 = vadd.f32 %v305, %v375
    %v379 = vxor.u32 %v378, 2147483648
    %v380 = vmul.f32 %v379, 1.442695
    %v381 = vpow.pop %v380
    %v382 = vadd.f32 %v381, 1.0
    %v383 = vrcp.pop %v382
    %v384 = vmul.f32 1.0, %v383
    %v385 = vtanh.pop %v378
    %v386 = vmul.f32 %v384, %v292
    %388 = vrot.lane.b32.xlu0 %v385, 32
    %v389 = vpop.permute.xlu0 %388
    %v391 = vmul.f32 %v384, %v389
    %393 = vrot.lane.b32.xlu0 %v391, 32
    %v394 = vpop.permute.xlu0 %393
    %v396 = vadd.f32 %v386, %v394
    %v397 = vtanh.pop %v396
    %399 = vrot.lane.b32.xlu0 %v397, 32
    %v400 = vpop.permute.xlu0 %399
    %v402 = vmul.f32 %v384, %v400
    %404 = vrot.lane.b32.xlu0 %v402, 64
    %v405 = vpop.permute.xlu0 %404
    %407 = vst.msk [vmem:[#allocation2 + $0x2] sm:$0x3] %vm303, %v405
    %v408 = vld [vmem:[#allocation3 + $0x4] sm:$0x3]
    %v409 = vsel %vm200, %v405, 0
    %411 = vmatprep.subr.mxu0 0.0
    %412 = vmatpush1.msra.mxu0 %v195
    %413 = vmatprep.subr.mxu0 0.0
    %414 = vmatpush1.msra.mxu0 %v196
    %415 = vmatprep.subr.mxu0 0.0
    %416 = vmatpush1.msra.mxu0 %v197
    %417 = vmatprep.subr.mxu0 0.0
    %418 = vmatpush1.msra.mxu0 %v198
    %419 = vmatprep.subr.mxu0 0.0
    %420 = vmatpush1.msra.mxu0 0.0
    %421 = vmatprep.subr.mxu0 0.0
    %422 = vmatpush1.msra.mxu0 0.0
    %423 = vmatprep.subr.mxu0 0.0
    %424 = vmatpush1.msra.mxu0 0.0
    %425 = vmatprep.subr.mxu0 0.0
    %426 = vmatpush1.msra.mxu0 0.0
    %427 = vmatprep.subr.mxu0 0.0
    %428 = vmatpush1.msra.mxu0 0.0
    %429 = vmatprep.subr.mxu0 0.0
    %430 = vmatpush1.msra.mxu0 0.0
    %431 = vmatprep.subr.mxu0 0.0
    %432 = vmatpush1.msra.mxu0 0.0
    %433 = vmatprep.subr.mxu0 0.0
    %434 = vmatpush1.msra.mxu0 0.0
    %435 = vmatprep.subr.mxu0 0.0
    %436 = vmatpush1.msra.mxu0 0.0
    %437 = vmatprep.subr.mxu0 0.0
    %438 = vmatpush1.msra.mxu0 0.0
    %439 = vmatprep.subr.mxu0 0.0
    %440 = vmatpush1.msra.mxu0 0.0
    %441 = vmatprep.subr.mxu0 0.0
    %442 = vmatpush1.msra.mxu0 0.0
    %443 = vmatprep.subr.mxu0 0.0
    %444 = vmatpush1.msra.mxu0 0.0
    %445 = vmatprep.subr.mxu0 0.0
    %446 = vmatpush1.msra.mxu0 0.0
    %447 = vmatprep.subr.mxu0 0.0
    %448 = vmatpush1.msra.mxu0 0.0
    %449 = vmatprep.subr.mxu0 0.0
    %450 = vmatpush1.msra.mxu0 0.0
    %451 = vmatprep.subr.mxu0 0.0
    %452 = vmatpush1.msra.mxu0 0.0
    %453 = vmatprep.subr.mxu0 0.0
    %454 = vmatpush1.msra.mxu0 0.0
    %455 = vmatprep.subr.mxu0 0.0
    %456 = vmatpush1.msra.mxu0 0.0
    %457 = vmatprep.subr.mxu0 0.0
    %458 = vmatpush1.msra.mxu0 0.0
    %459 = vmatprep.subr.mxu0 0.0
    %460 = vmatpush1.msra.mxu0 0.0
    %461 = vmatprep.subr.mxu0 0.0
    %462 = vmatpush1.msra.mxu0 0.0
    %463 = vmatprep.subr.mxu0 0.0
    %464 = vmatpush1.msra.mxu0 0.0
    %465 = vmatprep.subr.mxu0 0.0
    %466 = vmatpush1.msra.mxu0 0.0
    %467 = vmatprep.subr.mxu0 0.0
    %468 = vmatpush1.msra.mxu0 0.0
    %469 = vmatprep.subr.mxu0 0.0
    %470 = vmatpush1.msra.mxu0 0.0
    %471 = vmatprep.subr.mxu0 0.0
    %472 = vmatpush1.msra.mxu0 0.0
    %473 = vmatprep.subr.mxu0 0.0
    %474 = vmatpush1.msra.mxu0 0.0
    %475 = vmatprep.mubr.f32.mxu0 0.0
    %476 = vmatmul.mubr.f32.gmra.mrb[0].mxu0 %v409
    %v477 = vpop.f32.mrb[0].mxu0
    %v478 = vadd.f32 0.0, %v477
    %v479 = vpop.f32.mrb[0].mxu0
    %480 = vdwg.mxu0
    %v481 = vadd.f32 %v408, %v478
    %v482 = vxor.u32 %v481, 2147483648
    %v483 = vmul.f32 %v482, 1.442695
    %v484 = vpow.pop %v483
    %v485 = vadd.f32 %v484, 1.0
    %v486 = vrcp.pop %v485
    %v487 = vmul.f32 1.0, %v486
    %v488 = vtanh.pop %v481
    %v489 = vmul.f32 %v487, %v396
    %491 = vrot.lane.b32.xlu0 %v488, 32
    %v492 = vpop.permute.xlu0 %491
    %v494 = vmul.f32 %v487, %v492
    %496 = vrot.lane.b32.xlu0 %v494, 32
    %v497 = vpop.permute.xlu0 %496
    %v499 = vadd.f32 %v489, %v497
    %v500 = vtanh.pop %v499
    %502 = vrot.lane.b32.xlu0 %v500, 32
    %v503 = vpop.permute.xlu0 %502
    %v505 = vmul.f32 %v487, %v503
    %507 = vrot.lane.b32.xlu0 %v505, 64
    %v508 = vpop.permute.xlu0 %507
    %510 = vst.msk [vmem:[#allocation2 + $0x4] sm:$0x3] %vm303, %v508
    %v511 = vld [vmem:[#allocation3 + $0x6] sm:$0x3]
    %v512 = vsel %vm200, %v508, 0
    %514 = vmatprep.subr.mxu0 0.0
    %515 = vmatpush1.msra.mxu0 %v195
    %516 = vmatprep.subr.mxu0 0.0
    %517 = vmatpush1.msra.mxu0 %v196
    %518 = vmatprep.subr.mxu0 0.0
    %519 = vmatpush1.msra.mxu0 %v197
    %520 = vmatprep.subr.mxu0 0.0
    %521 = vmatpush1.msra.mxu0 %v198
    %522 = vmatprep.subr.mxu0 0.0
    %523 = vmatpush1.msra.mxu0 0.0
    %524 = vmatprep.subr.mxu0 0.0
    %525 = vmatpush1.msra.mxu0 0.0
    %526 = vmatprep.subr.mxu0 0.0
    %527 = vmatpush1.msra.mxu0 0.0
    %528 = vmatprep.subr.mxu0 0.0
    %529 = vmatpush1.msra.mxu0 0.0
    %530 = vmatprep.subr.mxu0 0.0
    %531 = vmatpush1.msra.mxu0 0.0
    %532 = vmatprep.subr.mxu0 0.0
    %533 = vmatpush1.msra.mxu0 0.0
    %534 = vmatprep.subr.mxu0 0.0
    %535 = vmatpush1.msra.mxu0 0.0
    %536 = vmatprep.subr.mxu0 0.0
    %537 = vmatpush1.msra.mxu0 0.0
    %538 = vmatprep.subr.mxu0 0.0
    %539 = vmatpush1.msra.mxu0 0.0
    %540 = vmatprep.subr.mxu0 0.0
    %541 = vmatpush1.msra.mxu0 0.0
    %542 = vmatprep.subr.mxu0 0.0
    %543 = vmatpush1.msra.mxu0 0.0
    %544 = vmatprep.subr.mxu0 0.0
    %545 = vmatpush1.msra.mxu0 0.0
    %546 = vmatprep.subr.mxu0 0.0
    %547 = vmatpush1.msra.mxu0 0.0
    %548 = vmatprep.subr.mxu0 0.0
    %549 = vmatpush1.msra.mxu0 0.0
    %550 = vmatprep.subr.mxu0 0.0
    %551 = vmatpush1.msra.mxu0 0.0
    %552 = vmatprep.subr.mxu0 0.0
    %553 = vmatpush1.msra.mxu0 0.0
    %554 = vmatprep.subr.mxu0 0.0
    %555 = vmatpush1.msra.mxu0 0.0
    %556 = vmatprep.subr.mxu0 0.0
    %557 = vmatpush1.msra.mxu0 0.0
    %558 = vmatprep.subr.mxu0 0.0
    %559 = vmatpush1.msra.mxu0 0.0
    %560 = vmatprep.subr.mxu0 0.0
    %561 = vmatpush1.msra.mxu0 0.0
    %562 = vmatprep.subr.mxu0 0.0
    %563 = vmatpush1.msra.mxu0 0.0
    %564 = vmatprep.subr.mxu0 0.0
    %565 = vmatpush1.msra.mxu0 0.0
    %566 = vmatprep.subr.mxu0 0.0
    %567 = vmatpush1.msra.mxu0 0.0
    %568 = vmatprep.subr.mxu0 0.0
    %569 = vmatpush1.msra.mxu0 0.0
    %570 = vmatprep.subr.mxu0 0.0
    %571 = vmatpush1.msra.mxu0 0.0
    %572 = vmatprep.subr.mxu0 0.0
    %573 = vmatpush1.msra.mxu0 0.0
    %574 = vmatprep.subr.mxu0 0.0
    %575 = vmatpush1.msra.mxu0 0.0
    %576 = vmatprep.subr.mxu0 0.0
    %577 = vmatpush1.msra.mxu0 0.0
    %578 = vmatprep.mubr.f32.mxu0 0.0
    %579 = vmatmul.mubr.f32.gmra.mrb[0].mxu0 %v512
    %v580 = vpop.f32.mrb[0].mxu0
    %v581 = vadd.f32 0.0, %v580
    %v582 = vpop.f32.mrb[0].mxu0
    %583 = vdwg.mxu0
    %v584 = vadd.f32 %v511, %v581
    %v585 = vxor.u32 %v584, 2147483648
    %v586 = vmul.f32 %v585, 1.442695
    %v587 = vpow.pop %v586
    %v588 = vadd.f32 %v587, 1.0
    %v589 = vrcp.pop %v588
    %v590 = vmul.f32 1.0, %v589
    %v591 = vtanh.pop %v584
    %v592 = vmul.f32 %v590, %v499
    %594 = vrot.lane.b32.xlu0 %v591, 32
    %v595 = vpop.permute.xlu0 %594
    %v597 = vmul.f32 %v590, %v595
    %599 = vrot.lane.b32.xlu0 %v597, 32
    %v600 = vpop.permute.xlu0 %599
    %v602 = vadd.f32 %v592, %v600
    %v603 = vtanh.pop %v602
    %605 = vrot.lane.b32.xlu0 %v603, 32
    %v606 = vpop.permute.xlu0 %605
    %v608 = vmul.f32 %v590, %v606
    %610 = vrot.lane.b32.xlu0 %v608, 64
    %v611 = vpop.permute.xlu0 %610
    %613 = vst.msk [vmem:[#allocation2 + $0x6] sm:$0x3] %vm303, %v611
    %v614 = vld [vmem:[#allocation3 + $0x8] sm:$0x3]
    %v615 = vsel %vm200, %v611, 0
    %617 = vmatprep.subr.mxu0 0.0
    %618 = vmatpush1.msra.mxu0 %v195
    %619 = vmatprep.subr.mxu0 0.0
    %620 = vmatpush1.msra.mxu0 %v196
    %621 = vmatprep.subr.mxu0 0.0
    %622 = vmatpush1.msra.mxu0 %v197
    %623 = vmatprep.subr.mxu0 0.0
    %624 = vmatpush1.msra.mxu0 %v198
    %625 = vmatprep.subr.mxu0 0.0
    %626 = vmatpush1.msra.mxu0 0.0
    %627 = vmatprep.subr.mxu0 0.0
    %628 = vmatpush1.msra.mxu0 0.0
    %629 = vmatprep.subr.mxu0 0.0
    %630 = vmatpush1.msra.mxu0 0.0
    %631 = vmatprep.subr.mxu0 0.0
    %632 = vmatpush1.msra.mxu0 0.0
    %633 = vmatprep.subr.mxu0 0.0
    %634 = vmatpush1.msra.mxu0 0.0
    %635 = vmatprep.subr.mxu0 0.0
    %636 = vmatpush1.msra.mxu0 0.0
    %637 = vmatprep.subr.mxu0 0.0
    %638 = vmatpush1.msra.mxu0 0.0
    %639 = vmatprep.subr.mxu0 0.0
    %640 = vmatpush1.msra.mxu0 0.0
    %641 = vmatprep.subr.mxu0 0.0
    %642 = vmatpush1.msra.mxu0 0.0
    %643 = vmatprep.subr.mxu0 0.0
    %644 = vmatpush1.msra.mxu0 0.0
    %645 = vmatprep.subr.mxu0 0.0
    %646 = vmatpush1.msra.mxu0 0.0
    %647 = vmatprep.subr.mxu0 0.0
    %648 = vmatpush1.msra.mxu0 0.0
    %649 = vmatprep.subr.mxu0 0.0
    %650 = vmatpush1.msra.mxu0 0.0
    %651 = vmatprep.subr.mxu0 0.0
    %652 = vmatpush1.msra.mxu0 0.0
    %653 = vmatprep.subr.mxu0 0.0
    %654 = vmatpush1.msra.mxu0 0.0
    %655 = vmatprep.subr.mxu0 0.0
    %656 = vmatpush1.msra.mxu0 0.0
    %657 = vmatprep.subr.mxu0 0.0
    %658 = vmatpush1.msra.mxu0 0.0
    %659 = vmatprep.subr.mxu0 0.0
    %660 = vmatpush1.msra.mxu0 0.0
    %661 = vmatprep.subr.mxu0 0.0
    %662 = vmatpush1.msra.mxu0 0.0
    %663 = vmatprep.subr.mxu0 0.0
    %664 = vmatpush1.msra.mxu0 0.0
    %665 = vmatprep.subr.mxu0 0.0
    %666 = vmatpush1.msra.mxu0 0.0
    %667 = vmatprep.subr.mxu0 0.0
    %668 = vmatpush1.msra.mxu0 0.0
    %669 = vmatprep.subr.mxu0 0.0
    %670 = vmatpush1.msra.mxu0 0.0
    %671 = vmatprep.subr.mxu0 0.0
    %672 = vmatpush1.msra.mxu0 0.0
    %673 = vmatprep.subr.mxu0 0.0
    %674 = vmatpush1.msra.mxu0 0.0
    %675 = vmatprep.subr.mxu0 0.0
    %676 = vmatpush1.msra.mxu0 0.0
    %677 = vmatprep.subr.mxu0 0.0
    %678 = vmatpush1.msra.mxu0 0.0
    %679 = vmatprep.subr.mxu0 0.0
    %680 = vmatpush1.msra.mxu0 0.0
    %681 = vmatprep.mubr.f32.mxu0 0.0
    %682 = vmatmul.mubr.f32.gmra.mrb[0].mxu0 %v615
    %v683 = vpop.f32.mrb[0].mxu0
    %v684 = vadd.f32 0.0, %v683
    %v685 = vpop.f32.mrb[0].mxu0
    %686 = vdwg.mxu0
    %v687 = vadd.f32 %v614, %v684
    %v688 = vxor.u32 %v687, 2147483648
    %v689 = vmul.f32 %v688, 1.442695
    %v690 = vpow.pop %v689
    %v691 = vadd.f32 %v690, 1.0
    %v692 = vrcp.pop %v691
    %v693 = vmul.f32 1.0, %v692
    %v694 = vtanh.pop %v687
    %v695 = vmul.f32 %v693, %v602
    %697 = vrot.lane.b32.xlu0 %v694, 32
    %v698 = vpop.permute.xlu0 %697
    %v700 = vmul.f32 %v693, %v698
    %702 = vrot.lane.b32.xlu0 %v700, 32
    %v703 = vpop.permute.xlu0 %702
    %v705 = vadd.f32 %v695, %v703
    %v706 = vtanh.pop %v705
    %708 = vrot.lane.b32.xlu0 %v706, 32
    %v709 = vpop.permute.xlu0 %708
    %v711 = vmul.f32 %v693, %v709
    %713 = vrot.lane.b32.xlu0 %v711, 64
    %v714 = vpop.permute.xlu0 %713
    %716 = vst.msk [vmem:[#allocation2 + $0x8] sm:$0x3] %vm303, %v714
    %v717 = vld [vmem:[#allocation3 + $0xa] sm:$0x3]
    %v718 = vsel %vm200, %v714, 0
    %720 = vmatprep.subr.mxu0 0.0
    %721 = vmatpush1.msra.mxu0 %v195
    %722 = vmatprep.subr.mxu0 0.0
    %723 = vmatpush1.msra.mxu0 %v196
    %724 = vmatprep.subr.mxu0 0.0
    %725 = vmatpush1.msra.mxu0 %v197
    %726 = vmatprep.subr.mxu0 0.0
    %727 = vmatpush1.msra.mxu0 %v198
    %728 = vmatprep.subr.mxu0 0.0
    %729 = vmatpush1.msra.mxu0 0.0
    %730 = vmatprep.subr.mxu0 0.0
    %731 = vmatpush1.msra.mxu0 0.0
    %732 = vmatprep.subr.mxu0 0.0
    %733 = vmatpush1.msra.mxu0 0.0
    %734 = vmatprep.subr.mxu0 0.0
    %735 = vmatpush1.msra.mxu0 0.0
    %736 = vmatprep.subr.mxu0 0.0
    %737 = vmatpush1.msra.mxu0 0.0
    %738 = vmatprep.subr.mxu0 0.0
    %739 = vmatpush1.msra.mxu0 0.0
    %740 = vmatprep.subr.mxu0 0.0
    %741 = vmatpush1.msra.mxu0 0.0
    %742 = vmatprep.subr.mxu0 0.0
    %743 = vmatpush1.msra.mxu0 0.0
    %744 = vmatprep.subr.mxu0 0.0
    %745 = vmatpush1.msra.mxu0 0.0
    %746 = vmatprep.subr.mxu0 0.0
    %747 = vmatpush1.msra.mxu0 0.0
    %748 = vmatprep.subr.mxu0 0.0
    %749 = vmatpush1.msra.mxu0 0.0
    %750 = vmatprep.subr.mxu0 0.0
    %751 = vmatpush1.msra.mxu0 0.0
    %752 = vmatprep.subr.mxu0 0.0
    %753 = vmatpush1.msra.mxu0 0.0
    %754 = vmatprep.subr.mxu0 0.0
    %755 = vmatpush1.msra.mxu0 0.0
    %756 = vmatprep.subr.mxu0 0.0
    %757 = vmatpush1.msra.mxu0 0.0
    %758 = vmatprep.subr.mxu0 0.0
    %759 = vmatpush1.msra.mxu0 0.0
    %760 = vmatprep.subr.mxu0 0.0
    %761 = vmatpush1.msra.mxu0 0.0
    %762 = vmatprep.subr.mxu0 0.0
    %763 = vmatpush1.msra.mxu0 0.0
    %764 = vmatprep.subr.mxu0 0.0
    %765 = vmatpush1.msra.mxu0 0.0
    %766 = vmatprep.subr.mxu0 0.0
    %767 = vmatpush1.msra.mxu0 0.0
    %768 = vmatprep.subr.mxu0 0.0
    %769 = vmatpush1.msra.mxu0 0.0
    %770 = vmatprep.subr.mxu0 0.0
    %771 = vmatpush1.msra.mxu0 0.0
    %772 = vmatprep.subr.mxu0 0.0
    %773 = vmatpush1.msra.mxu0 0.0
    %774 = vmatprep.subr.mxu0 0.0
    %775 = vmatpush1.msra.mxu0 0.0
    %776 = vmatprep.subr.mxu0 0.0
    %777 = vmatpush1.msra.mxu0 0.0
    %778 = vmatprep.subr.mxu0 0.0
    %779 = vmatpush1.msra.mxu0 0.0
    %780 = vmatprep.subr.mxu0 0.0
    %781 = vmatpush1.msra.mxu0 0.0
    %782 = vmatprep.subr.mxu0 0.0
    %783 = vmatpush1.msra.mxu0 0.0
    %784 = vmatprep.mubr.f32.mxu0 0.0
    %785 = vmatmul.mubr.f32.gmra.mrb[0].mxu0 %v718
    %v786 = vpop.f32.mrb[0].mxu0
    %v787 = vadd.f32 0.0, %v786
    %v788 = vpop.f32.mrb[0].mxu0
    %789 = vdwg.mxu0
    %v790 = vadd.f32 %v717, %v787
    %v791 = vxor.u32 %v790, 2147483648
    %v792 = vmul.f32 %v791, 1.442695
    %v793 = vpow.pop %v792
    %v794 = vadd.f32 %v793, 1.0
    %v795 = vrcp.pop %v794
    %v796 = vmul.f32 1.0, %v795
    %v797 = vtanh.pop %v790
    %v798 = vmul.f32 %v796, %v705
    %800 = vrot.lane.b32.xlu0 %v797, 32
    %v801 = vpop.permute.xlu0 %800
    %v803 = vmul.f32 %v796, %v801
    %805 = vrot.lane.b32.xlu0 %v803, 32
    %v806 = vpop.permute.xlu0 %805
    %v808 = vadd.f32 %v798, %v806
    %v809 = vtanh.pop %v808
    %811 = vrot.lane.b32.xlu0 %v809, 32
    %v812 = vpop.permute.xlu0 %811
    %v814 = vmul.f32 %v796, %v812
    %816 = vrot.lane.b32.xlu0 %v814, 64
    %v817 = vpop.permute.xlu0 %816
    %819 = vst.msk [vmem:[#allocation2 + $0xa] sm:$0x3] %vm303, %v817
    %v820 = vld [vmem:[#allocation3 + $0xc] sm:$0x3]
    %v821 = vsel %vm200, %v817, 0
    %823 = vmatprep.subr.mxu0 0.0
    %824 = vmatpush1.msra.mxu0 %v195
    %825 = vmatprep.subr.mxu0 0.0
    %826 = vmatpush1.msra.mxu0 %v196
    %827 = vmatprep.subr.mxu0 0.0
    %828 = vmatpush1.msra.mxu0 %v197
    %829 = vmatprep.subr.mxu0 0.0
    %830 = vmatpush1.msra.mxu0 %v198
    %831 = vmatprep.subr.mxu0 0.0
    %832 = vmatpush1.msra.mxu0 0.0
    %833 = vmatprep.subr.mxu0 0.0
    %834 = vmatpush1.msra.mxu0 0.0
    %835 = vmatprep.subr.mxu0 0.0
    %836 = vmatpush1.msra.mxu0 0.0
    %837 = vmatprep.subr.mxu0 0.0
    %838 = vmatpush1.msra.mxu0 0.0
    %839 = vmatprep.subr.mxu0 0.0
    %840 = vmatpush1.msra.mxu0 0.0
    %841 = vmatprep.subr.mxu0 0.0
    %842 = vmatpush1.msra.mxu0 0.0
    %843 = vmatprep.subr.mxu0 0.0
    %844 = vmatpush1.msra.mxu0 0.0
    %845 = vmatprep.subr.mxu0 0.0
    %846 = vmatpush1.msra.mxu0 0.0
    %847 = vmatprep.subr.mxu0 0.0
    %848 = vmatpush1.msra.mxu0 0.0
    %849 = vmatprep.subr.mxu0 0.0
    %850 = vmatpush1.msra.mxu0 0.0
    %851 = vmatprep.subr.mxu0 0.0
    %852 = vmatpush1.msra.mxu0 0.0
    %853 = vmatprep.subr.mxu0 0.0
    %854 = vmatpush1.msra.mxu0 0.0
    %855 = vmatprep.subr.mxu0 0.0
    %856 = vmatpush1.msra.mxu0 0.0
    %857 = vmatprep.subr.mxu0 0.0
    %858 = vmatpush1.msra.mxu0 0.0
    %859 = vmatprep.subr.mxu0 0.0
    %860 = vmatpush1.msra.mxu0 0.0
    %861 = vmatprep.subr.mxu0 0.0
    %862 = vmatpush1.msra.mxu0 0.0
    %863 = vmatprep.subr.mxu0 0.0
    %864 = vmatpush1.msra.mxu0 0.0
    %865 = vmatprep.subr.mxu0 0.0
    %866 = vmatpush1.msra.mxu0 0.0
    %867 = vmatprep.subr.mxu0 0.0
    %868 = vmatpush1.msra.mxu0 0.0
    %869 = vmatprep.subr.mxu0 0.0
    %870 = vmatpush1.msra.mxu0 0.0
    %871 = vmatprep.subr.mxu0 0.0
    %872 = vmatpush1.msra.mxu0 0.0
    %873 = vmatprep.subr.mxu0 0.0
    %874 = vmatpush1.msra.mxu0 0.0
    %875 = vmatprep.subr.mxu0 0.0
    %876 = vmatpush1.msra.mxu0 0.0
    %877 = vmatprep.subr.mxu0 0.0
    %878 = vmatpush1.msra.mxu0 0.0
    %879 = vmatprep.subr.mxu0 0.0
    %880 = vmatpush1.msra.mxu0 0.0
    %881 = vmatprep.subr.mxu0 0.0
    %882 = vmatpush1.msra.mxu0 0.0
    %883 = vmatprep.subr.mxu0 0.0
    %884 = vmatpush1.msra.mxu0 0.0
    %885 = vmatprep.subr.mxu0 0.0
    %886 = vmatpush1.msra.mxu0 0.0
    %887 = vmatprep.mubr.f32.mxu0 0.0
    %888 = vmatmul.mubr.f32.gmra.mrb[0].mxu0 %v821
    %v889 = vpop.f32.mrb[0].mxu0
    %v890 = vadd.f32 0.0, %v889
    %v891 = vpop.f32.mrb[0].mxu0
    %892 = vdwg.mxu0
    %v893 = vadd.f32 %v820, %v890
    %v894 = vxor.u32 %v893, 2147483648
    %v895 = vmul.f32 %v894, 1.442695
    %v896 = vpow.pop %v895
    %v897 = vadd.f32 %v896, 1.0
    %v898 = vrcp.pop %v897
    %v899 = vmul.f32 1.0, %v898
    %v900 = vtanh.pop %v893
    %v901 = vmul.f32 %v899, %v808
    %903 = vrot.lane.b32.xlu0 %v900, 32
    %v904 = vpop.permute.xlu0 %903
    %v906 = vmul.f32 %v899, %v904
    %908 = vrot.lane.b32.xlu0 %v906, 32
    %v909 = vpop.permute.xlu0 %908
    %v911 = vadd.f32 %v901, %v909
    %v912 = vtanh.pop %v911
    %914 = vrot.lane.b32.xlu0 %v912, 32
    %v915 = vpop.permute.xlu0 %914
    %v917 = vmul.f32 %v899, %v915
    %919 = vrot.lane.b32.xlu0 %v917, 64
    %v920 = vpop.permute.xlu0 %919
    %922 = vst.msk [vmem:[#allocation2 + $0xc] sm:$0x3] %vm303, %v920
    %v923 = vld [vmem:[#allocation3 + $0xe] sm:$0x3]
    %v924 = vsel %vm200, %v920, 0
    %926 = vmatprep.subr.mxu0 0.0
    %927 = vmatpush1.msra.mxu0 %v195
    %928 = vmatprep.subr.mxu0 0.0
    %929 = vmatpush1.msra.mxu0 %v196
    %930 = vmatprep.subr.mxu0 0.0
    %931 = vmatpush1.msra.mxu0 %v197
    %932 = vmatprep.subr.mxu0 0.0
    %933 = vmatpush1.msra.mxu0 %v198
    %934 = vmatprep.subr.mxu0 0.0
    %935 = vmatpush1.msra.mxu0 0.0
    %936 = vmatprep.subr.mxu0 0.0
    %937 = vmatpush1.msra.mxu0 0.0
    %938 = vmatprep.subr.mxu0 0.0
    %939 = vmatpush1.msra.mxu0 0.0
    %940 = vmatprep.subr.mxu0 0.0
    %941 = vmatpush1.msra.mxu0 0.0
    %942 = vmatprep.subr.mxu0 0.0
    %943 = vmatpush1.msra.mxu0 0.0
    %944 = vmatprep.subr.mxu0 0.0
    %945 = vmatpush1.msra.mxu0 0.0
    %946 = vmatprep.subr.mxu0 0.0
    %947 = vmatpush1.msra.mxu0 0.0
    %948 = vmatprep.subr.mxu0 0.0
    %949 = vmatpush1.msra.mxu0 0.0
    %950 = vmatprep.subr.mxu0 0.0
    %951 = vmatpush1.msra.mxu0 0.0
    %952 = vmatprep.subr.mxu0 0.0
    %953 = vmatpush1.msra.mxu0 0.0
    %954 = vmatprep.subr.mxu0 0.0
    %955 = vmatpush1.msra.mxu0 0.0
    %956 = vmatprep.subr.mxu0 0.0
    %957 = vmatpush1.msra.mxu0 0.0
    %958 = vmatprep.subr.mxu0 0.0
    %959 = vmatpush1.msra.mxu0 0.0
    %960 = vmatprep.subr.mxu0 0.0
    %961 = vmatpush1.msra.mxu0 0.0
    %962 = vmatprep.subr.mxu0 0.0
    %963 = vmatpush1.msra.mxu0 0.0
    %964 = vmatprep.subr.mxu0 0.0
    %965 = vmatpush1.msra.mxu0 0.0
    %966 = vmatprep.subr.mxu0 0.0
    %967 = vmatpush1.msra.mxu0 0.0
    %968 = vmatprep.subr.mxu0 0.0
    %969 = vmatpush1.msra.mxu0 0.0
    %970 = vmatprep.subr.mxu0 0.0
    %971 = vmatpush1.msra.mxu0 0.0
    %972 = vmatprep.subr.mxu0 0.0
    %973 = vmatpush1.msra.mxu0 0.0
    %974 = vmatprep.subr.mxu0 0.0
    %975 = vmatpush1.msra.mxu0 0.0
    %976 = vmatprep.subr.mxu0 0.0
    %977 = vmatpush1.msra.mxu0 0.0
    %978 = vmatprep.subr.mxu0 0.0
    %979 = vmatpush1.msra.mxu0 0.0
    %980 = vmatprep.subr.mxu0 0.0
    %981 = vmatpush1.msra.mxu0 0.0
    %982 = vmatprep.subr.mxu0 0.0
    %983 = vmatpush1.msra.mxu0 0.0
    %984 = vmatprep.subr.mxu0 0.0
    %985 = vmatpush1.msra.mxu0 0.0
    %986 = vmatprep.subr.mxu0 0.0
    %987 = vmatpush1.msra.mxu0 0.0
    %988 = vmatprep.subr.mxu0 0.0
    %989 = vmatpush1.msra.mxu0 0.0
    %990 = vmatprep.mubr.f32.mxu0 0.0
    %991 = vmatmul.mubr.f32.gmra.mrb[0].mxu0 %v924
    %v992 = vpop.f32.mrb[0].mxu0
    %v993 = vadd.f32 0.0, %v992
    %v994 = vpop.f32.mrb[0].mxu0
    %995 = vdwg.mxu0
    %v996 = vadd.f32 %v923, %v993
    %v997 = vxor.u32 %v996, 2147483648
    %v998 = vmul.f32 %v997, 1.442695
    %v999 = vpow.pop %v998
    %v1000 = vadd.f32 %v999, 1.0
    %v1001 = vrcp.pop %v1000
    %v1002 = vmul.f32 1.0, %v1001
    %v1003 = vtanh.pop %v996
    %v1004 = vmul.f32 %v1002, %v911
    %1006 = vrot.lane.b32.xlu0 %v1003, 32
    %v1007 = vpop.permute.xlu0 %1006
    %v1009 = vmul.f32 %v1002, %v1007
    %1011 = vrot.lane.b32.xlu0 %v1009, 32
    %v1012 = vpop.permute.xlu0 %1011
    %v1014 = vadd.f32 %v1004, %v1012
    %v1015 = vtanh.pop %v1014
    %1017 = vrot.lane.b32.xlu0 %v1015, 32
    %v1018 = vpop.permute.xlu0 %1017
    %v1020 = vmul.f32 %v1002, %v1018
    %1022 = vrot.lane.b32.xlu0 %v1020, 64
    %v1023 = vpop.permute.xlu0 %1022
    %1025 = vst.msk [vmem:[#allocation2 + $0xe] sm:$0x3] %vm303, %v1023
    %v1026 = vld [vmem:[#allocation2] sm:$0xff]
    %v1027 = vld [vmem:[#allocation2 + $0x8] sm:$0xff]
    %v1028 = vld [vmem:[%s4] sm:$0xff]
    %v1029 = vld [vmem:[%s4 + $0x8] sm:$0xff]
    %v1030 = vld [vmem:[%s4 + $0x10] sm:$0xff]
    %v1031 = vld [vmem:[%s4 + $0x18] sm:$0xff]
    %v1032 = vld [vmem:[#allocation7] sm:$0x1]
    %v1034 = vlaneseq
    %v1035 = vshrl.u32 %v1034, 7
    %v1036 = vsub.s32 0, %v1035
    %v1037 = vrot.slane %v1032, %v1036
    %v1040 = vsel %vm200, %v1026, 0
    %v1043 = vsel %vm200, %v1027, 0
    %1045 = vmatprep.subr.mxu0 0.0
    %1046 = vmatpush1.msra.mxu0 %v1028
    %1047 = vmatprep.subr.mxu0 0.0
    %1048 = vmatpush1.msra.mxu0 %v1029
    %1049 = vmatprep.subr.mxu0 0.0
    %1050 = vmatpush1.msra.mxu0 %v1030
    %1051 = vmatprep.subr.mxu0 0.0
    %1052 = vmatpush1.msra.mxu0 %v1031
    %1053 = vmatprep.subr.mxu0 0.0
    %1054 = vmatpush1.msra.mxu0 0.0
    %1055 = vmatprep.subr.mxu0 0.0
    %1056 = vmatpush1.msra.mxu0 0.0
    %1057 = vmatprep.subr.mxu0 0.0
    %1058 = vmatpush1.msra.mxu0 0.0
    %1059 = vmatprep.subr.mxu0 0.0
    %1060 = vmatpush1.msra.mxu0 0.0
    %1061 = vmatprep.subr.mxu0 0.0
    %1062 = vmatpush1.msra.mxu0 0.0
    %1063 = vmatprep.subr.mxu0 0.0
    %1064 = vmatpush1.msra.mxu0 0.0
    %1065 = vmatprep.subr.mxu0 0.0
    %1066 = vmatpush1.msra.mxu0 0.0
    %1067 = vmatprep.subr.mxu0 0.0
    %1068 = vmatpush1.msra.mxu0 0.0
    %1069 = vmatprep.subr.mxu0 0.0
    %1070 = vmatpush1.msra.mxu0 0.0
    %1071 = vmatprep.subr.mxu0 0.0
    %1072 = vmatpush1.msra.mxu0 0.0
    %1073 = vmatprep.subr.mxu0 0.0
    %1074 = vmatpush1.msra.mxu0 0.0
    %1075 = vmatprep.subr.mxu0 0.0
    %1076 = vmatpush1.msra.mxu0 0.0
    %1077 = vmatprep.subr.mxu0 0.0
    %1078 = vmatpush1.msra.mxu0 0.0
    %1079 = vmatprep.subr.mxu0 0.0
    %1080 = vmatpush1.msra.mxu0 0.0
    %1081 = vmatprep.subr.mxu0 0.0
    %1082 = vmatpush1.msra.mxu0 0.0
    %1083 = vmatprep.subr.mxu0 0.0
    %1084 = vmatpush1.msra.mxu0 0.0
    %1085 = vmatprep.subr.mxu0 0.0
    %1086 = vmatpush1.msra.mxu0 0.0
    %1087 = vmatprep.subr.mxu0 0.0
    %1088 = vmatpush1.msra.mxu0 0.0
    %1089 = vmatprep.subr.mxu0 0.0
    %1090 = vmatpush1.msra.mxu0 0.0
    %1091 = vmatprep.subr.mxu0 0.0
    %1092 = vmatpush1.msra.mxu0 0.0
    %1093 = vmatprep.subr.mxu0 0.0
    %1094 = vmatpush1.msra.mxu0 0.0
    %1095 = vmatprep.subr.mxu0 0.0
    %1096 = vmatpush1.msra.mxu0 0.0
    %1097 = vmatprep.subr.mxu0 0.0
    %1098 = vmatpush1.msra.mxu0 0.0
    %1099 = vmatprep.subr.mxu0 0.0
    %1100 = vmatpush1.msra.mxu0 0.0
    %1101 = vmatprep.subr.mxu0 0.0
    %1102 = vmatpush1.msra.mxu0 0.0
    %1103 = vmatprep.subr.mxu0 0.0
    %1104 = vmatpush1.msra.mxu0 0.0
    %1105 = vmatprep.subr.mxu0 0.0
    %1106 = vmatpush1.msra.mxu0 0.0
    %1107 = vmatprep.subr.mxu0 0.0
    %1108 = vmatpush1.msra.mxu0 0.0
    %1109 = vmatprep.mubr.f32.mxu0 0.0
    %1110 = vmatmul.mubr.f32.gmra.mrb[0].mxu0 %v1040
    %v1111 = vpop.f32.mrb[0].mxu0
    %v1112 = vadd.f32 %v1037, %v1111
    %v1113 = vpop.f32.mrb[0].mxu0
    %1114 = vmatprep.mubr.f32.mxu0 0.0
    %1115 = vmatmul.mubr.f32.gmra.mrb[0].mxu0 %v1043
    %v1116 = vpop.f32.mrb[0].mxu0
    %v1117 = vadd.f32 %v1037, %v1116
    %v1118 = vpop.f32.mrb[0].mxu0
    %1119 = vdwg.mxu0
    %1120 = vst [vmem:[#allocation3] sm:$0xff] %v1112
    %1121 = vst [vmem:[#allocation3 + $0x8] sm:$0xff] %v1117
    %v1122 = vld [vmem:[%s5] sm:$0xff]
    %v1123 = vld [vmem:[%s5 + $0x8] sm:$0xff]
    %v1124 = vld [vmem:[%s5 + $0x10] sm:$0xff]
    %v1125 = vld [vmem:[%s5 + $0x18] sm:$0xff]
    %v1126 = vld [vmem:[#allocation3] sm:$0x3]
    %1127 = vmatprep.subr.mxu0 0.0
    %1128 = vmatpush1.msra.mxu0 %v1122
    %1129 = vmatprep.subr.mxu0 0.0
    %1130 = vmatpush1.msra.mxu0 %v1123
    %1131 = vmatprep.subr.mxu0 0.0
    %1132 = vmatpush1.msra.mxu0 %v1124
    %1133 = vmatprep.subr.mxu0 0.0
    %1134 = vmatpush1.msra.mxu0 %v1125
    %1135 = vmatprep.subr.mxu0 0.0
    %1136 = vmatpush1.msra.mxu0 0.0
    %1137 = vmatprep.subr.mxu0 0.0
    %1138 = vmatpush1.msra.mxu0 0.0
    %1139 = vmatprep.subr.mxu0 0.0
    %1140 = vmatpush1.msra.mxu0 0.0
    %1141 = vmatprep.subr.mxu0 0.0
    %1142 = vmatpush1.msra.mxu0 0.0
    %1143 = vmatprep.subr.mxu0 0.0
    %1144 = vmatpush1.msra.mxu0 0.0
    %1145 = vmatprep.subr.mxu0 0.0
    %1146 = vmatpush1.msra.mxu0 0.0
    %1147 = vmatprep.subr.mxu0 0.0
    %1148 = vmatpush1.msra.mxu0 0.0
    %1149 = vmatprep.subr.mxu0 0.0
    %1150 = vmatpush1.msra.mxu0 0.0
    %1151 = vmatprep.subr.mxu0 0.0
    %1152 = vmatpush1.msra.mxu0 0.0
    %1153 = vmatprep.subr.mxu0 0.0
    %1154 = vmatpush1.msra.mxu0 0.0
    %1155 = vmatprep.subr.mxu0 0.0
    %1156 = vmatpush1.msra.mxu0 0.0
    %1157 = vmatprep.subr.mxu0 0.0
    %1158 = vmatpush1.msra.mxu0 0.0
    %1159 = vmatprep.subr.mxu0 0.0
    %1160 = vmatpush1.msra.mxu0 0.0
    %1161 = vmatprep.subr.mxu0 0.0
    %1162 = vmatpush1.msra.mxu0 0.0
    %1163 = vmatprep.subr.mxu0 0.0
    %1164 = vmatpush1.msra.mxu0 0.0
    %1165 = vmatprep.subr.mxu0 0.0
    %1166 = vmatpush1.msra.mxu0 0.0
    %1167 = vmatprep.subr.mxu0 0.0
    %1168 = vmatpush1.msra.mxu0 0.0
    %1169 = vmatprep.subr.mxu0 0.0
    %1170 = vmatpush1.msra.mxu0 0.0
    %1171 = vmatprep.subr.mxu0 0.0
    %1172 = vmatpush1.msra.mxu0 0.0
    %1173 = vmatprep.subr.mxu0 0.0
    %1174 = vmatpush1.msra.mxu0 0.0
    %1175 = vmatprep.subr.mxu0 0.0
    %1176 = vmatpush1.msra.mxu0 0.0
    %1177 = vmatprep.subr.mxu0 0.0
    %1178 = vmatpush1.msra.mxu0 0.0
    %1179 = vmatprep.subr.mxu0 0.0
    %1180 = vmatpush1.msra.mxu0 0.0
    %1181 = vmatprep.subr.mxu0 0.0
    %1182 = vmatpush1.msra.mxu0 0.0
    %1183 = vmatprep.subr.mxu0 0.0
    %1184 = vmatpush1.msra.mxu0 0.0
    %1185 = vmatprep.subr.mxu0 0.0
    %1186 = vmatpush1.msra.mxu0 0.0
    %1187 = vmatprep.subr.mxu0 0.0
    %1188 = vmatpush1.msra.mxu0 0.0
    %1189 = vmatprep.subr.mxu0 0.0
    %1190 = vmatpush1.msra.mxu0 0.0
    %1191 = vmatprep.mubr.f32.mxu0 0.0
    %1192 = vmatmul.mubr.f32.gmra.mrb[0].mxu0 %v202
    %v1193 = vpop.f32.mrb[0].mxu0
    %v1194 = vadd.f32 0.0, %v1193
    %v1195 = vpop.f32.mrb[0].mxu0
    %1196 = vdwg.mxu0
    %v1197 = vadd.f32 %v1126, %v1194
    %v1198 = vxor.u32 %v1197, 2147483648
    %v1199 = vmul.f32 %v1198, 1.442695
    %v1200 = vpow.pop %v1199
    %v1201 = vadd.f32 %v1200, 1.0
    %v1202 = vrcp.pop %v1201
    %v1203 = vmul.f32 1.0, %v1202
    %v1204 = vtanh.pop %v1197
    %v1205 = vmul.f32 %v1203, 0.0
    %1207 = vrot.lane.b32.xlu0 %v1204, 32
    %v1208 = vpop.permute.xlu0 %1207
    %v1210 = vmul.f32 %v1203, %v1208
    %1212 = vrot.lane.b32.xlu0 %v1210, 32
    %v1213 = vpop.permute.xlu0 %1212
    %v1215 = vadd.f32 %v1205, %v1213
    %v1216 = vtanh.pop %v1215
    %1218 = vrot.lane.b32.xlu0 %v1216, 32
    %v1219 = vpop.permute.xlu0 %1218
    %v1221 = vmul.f32 %v1203, %v1219
    %v1222 = vld [vmem:[#allocation3 + $0x2] sm:$0x3]
    %1224 = vrot.lane.b32.xlu0 %v1221, 64
    %v1225 = vpop.permute.xlu0 %1224
    %v1226 = vsel %vm200, %v1225, 0
    %1228 = vmatprep.subr.mxu0 0.0
    %1229 = vmatpush1.msra.mxu0 %v1122
    %1230 = vmatprep.subr.mxu0 0.0
    %1231 = vmatpush1.msra.mxu0 %v1123
    %1232 = vmatprep.subr.mxu0 0.0
    %1233 = vmatpush1.msra.mxu0 %v1124
    %1234 = vmatprep.subr.mxu0 0.0
    %1235 = vmatpush1.msra.mxu0 %v1125
    %1236 = vmatprep.subr.mxu0 0.0
    %1237 = vmatpush1.msra.mxu0 0.0
    %1238 = vmatprep.subr.mxu0 0.0
    %1239 = vmatpush1.msra.mxu0 0.0
    %1240 = vmatprep.subr.mxu0 0.0
    %1241 = vmatpush1.msra.mxu0 0.0
    %1242 = vmatprep.subr.mxu0 0.0
    %1243 = vmatpush1.msra.mxu0 0.0
    %1244 = vmatprep.subr.mxu0 0.0
    %1245 = vmatpush1.msra.mxu0 0.0
    %1246 = vmatprep.subr.mxu0 0.0
    %1247 = vmatpush1.msra.mxu0 0.0
    %1248 = vmatprep.subr.mxu0 0.0
    %1249 = vmatpush1.msra.mxu0 0.0
    %1250 = vmatprep.subr.mxu0 0.0
    %1251 = vmatpush1.msra.mxu0 0.0
    %1252 = vmatprep.subr.mxu0 0.0
    %1253 = vmatpush1.msra.mxu0 0.0
    %1254 = vmatprep.subr.mxu0 0.0
    %1255 = vmatpush1.msra.mxu0 0.0
    %1256 = vmatprep.subr.mxu0 0.0
    %1257 = vmatpush1.msra.mxu0 0.0
    %1258 = vmatprep.subr.mxu0 0.0
    %1259 = vmatpush1.msra.mxu0 0.0
    %1260 = vmatprep.subr.mxu0 0.0
    %1261 = vmatpush1.msra.mxu0 0.0
    %1262 = vmatprep.subr.mxu0 0.0
    %1263 = vmatpush1.msra.mxu0 0.0
    %1264 = vmatprep.subr.mxu0 0.0
    %1265 = vmatpush1.msra.mxu0 0.0
    %1266 = vmatprep.subr.mxu0 0.0
    %1267 = vmatpush1.msra.mxu0 0.0
    %1268 = vmatprep.subr.mxu0 0.0
    %1269 = vmatpush1.msra.mxu0 0.0
    %1270 = vmatprep.subr.mxu0 0.0
    %1271 = vmatpush1.msra.mxu0 0.0
    %1272 = vmatprep.subr.mxu0 0.0
    %1273 = vmatpush1.msra.mxu0 0.0
    %1274 = vmatprep.subr.mxu0 0.0
    %1275 = vmatpush1.msra.mxu0 0.0
    %1276 = vmatprep.subr.mxu0 0.0
    %1277 = vmatpush1.msra.mxu0 0.0
    %1278 = vmatprep.subr.mxu0 0.0
    %1279 = vmatpush1.msra.mxu0 0.0
    %1280 = vmatprep.subr.mxu0 0.0
    %1281 = vmatpush1.msra.mxu0 0.0
    %1282 = vmatprep.subr.mxu0 0.0
    %1283 = vmatpush1.msra.mxu0 0.0
    %1284 = vmatprep.subr.mxu0 0.0
    %1285 = vmatpush1.msra.mxu0 0.0
    %1286 = vmatprep.subr.mxu0 0.0
    %1287 = vmatpush1.msra.mxu0 0.0
    %1288 = vmatprep.subr.mxu0 0.0
    %1289 = vmatpush1.msra.mxu0 0.0
    %1290 = vmatprep.subr.mxu0 0.0
    %1291 = vmatpush1.msra.mxu0 0.0
    %1292 = vmatprep.mubr.f32.mxu0 0.0
    %1293 = vmatmul.mubr.f32.gmra.mrb[0].mxu0 %v1226
    %v1294 = vpop.f32.mrb[0].mxu0
    %v1295 = vadd.f32 0.0, %v1294
    %v1296 = vpop.f32.mrb[0].mxu0
    %1297 = vdwg.mxu0
    %v1298 = vadd.f32 %v1222, %v1295
    %v1299 = vxor.u32 %v1298, 2147483648
    %v1300 = vmul.f32 %v1299, 1.442695
    %v1301 = vpow.pop %v1300
    %v1302 = vadd.f32 %v1301, 1.0
    %v1303 = vrcp.pop %v1302
    %v1304 = vmul.f32 1.0, %v1303
    %v1305 = vtanh.pop %v1298
    %v1306 = vmul.f32 %v1304, %v1215
    %1308 = vrot.lane.b32.xlu0 %v1305, 32
    %v1309 = vpop.permute.xlu0 %1308
    %v1311 = vmul.f32 %v1304, %v1309
    %1313 = vrot.lane.b32.xlu0 %v1311, 32
    %v1314 = vpop.permute.xlu0 %1313
    %v1316 = vadd.f32 %v1306, %v1314
    %v1317 = vtanh.pop %v1316
    %1319 = vrot.lane.b32.xlu0 %v1317, 32
    %v1320 = vpop.permute.xlu0 %1319
    %v1322 = vmul.f32 %v1304, %v1320
    %v1323 = vld [vmem:[#allocation3 + $0x4] sm:$0x3]
    %1325 = vrot.lane.b32.xlu0 %v1322, 64
    %v1326 = vpop.permute.xlu0 %1325
    %v1327 = vsel %vm200, %v1326, 0
    %1329 = vmatprep.subr.mxu0 0.0
    %1330 = vmatpush1.msra.mxu0 %v1122
    %1331 = vmatprep.subr.mxu0 0.0
    %1332 = vmatpush1.msra.mxu0 %v1123
    %1333 = vmatprep.subr.mxu0 0.0
    %1334 = vmatpush1.msra.mxu0 %v1124
    %1335 = vmatprep.subr.mxu0 0.0
    %1336 = vmatpush1.msra.mxu0 %v1125
    %1337 = vmatprep.subr.mxu0 0.0
    %1338 = vmatpush1.msra.mxu0 0.0
    %1339 = vmatprep.subr.mxu0 0.0
    %1340 = vmatpush1.msra.mxu0 0.0
    %1341 = vmatprep.subr.mxu0 0.0
    %1342 = vmatpush1.msra.mxu0 0.0
    %1343 = vmatprep.subr.mxu0 0.0
    %1344 = vmatpush1.msra.mxu0 0.0
    %1345 = vmatprep.subr.mxu0 0.0
    %1346 = vmatpush1.msra.mxu0 0.0
    %1347 = vmatprep.subr.mxu0 0.0
    %1348 = vmatpush1.msra.mxu0 0.0
    %1349 = vmatprep.subr.mxu0 0.0
    %1350 = vmatpush1.msra.mxu0 0.0
    %1351 = vmatprep.subr.mxu0 0.0
    %1352 = vmatpush1.msra.mxu0 0.0
    %1353 = vmatprep.subr.mxu0 0.0
    %1354 = vmatpush1.msra.mxu0 0.0
    %1355 = vmatprep.subr.mxu0 0.0
    %1356 = vmatpush1.msra.mxu0 0.0
    %1357 = vmatprep.subr.mxu0 0.0
    %1358 = vmatpush1.msra.mxu0 0.0
    %1359 = vmatprep.subr.mxu0 0.0
    %1360 = vmatpush1.msra.mxu0 0.0
    %1361 = vmatprep.subr.mxu0 0.0
    %1362 = vmatpush1.msra.mxu0 0.0
    %1363 = vmatprep.subr.mxu0 0.0
    %1364 = vmatpush1.msra.mxu0 0.0
    %1365 = vmatprep.subr.mxu0 0.0
    %1366 = vmatpush1.msra.mxu0 0.0
    %1367 = vmatprep.subr.mxu0 0.0
    %1368 = vmatpush1.msra.mxu0 0.0
    %1369 = vmatprep.subr.mxu0 0.0
    %1370 = vmatpush1.msra.mxu0 0.0
    %1371 = vmatprep.subr.mxu0 0.0
    %1372 = vmatpush1.msra.mxu0 0.0
    %1373 = vmatprep.subr.mxu0 0.0
    %1374 = vmatpush1.msra.mxu0 0.0
    %1375 = vmatprep.subr.mxu0 0.0
    %1376 = vmatpush1.msra.mxu0 0.0
    %1377 = vmatprep.subr.mxu0 0.0
    %1378 = vmatpush1.msra.mxu0 0.0
    %1379 = vmatprep.subr.mxu0 0.0
    %1380 = vmatpush1.msra.mxu0 0.0
    %1381 = vmatprep.subr.mxu0 0.0
    %1382 = vmatpush1.msra.mxu0 0.0
    %1383 = vmatprep.subr.mxu0 0.0
    %1384 = vmatpush1.msra.mxu0 0.0
    %1385 = vmatprep.subr.mxu0 0.0
    %1386 = vmatpush1.msra.mxu0 0.0
    %1387 = vmatprep.subr.mxu0 0.0
    %1388 = vmatpush1.msra.mxu0 0.0
    %1389 = vmatprep.subr.mxu0 0.0
    %1390 = vmatpush1.msra.mxu0 0.0
    %1391 = vmatprep.subr.mxu0 0.0
    %1392 = vmatpush1.msra.mxu0 0.0
    %1393 = vmatprep.mubr.f32.mxu0 0.0
    %1394 = vmatmul.mubr.f32.gmra.mrb[0].mxu0 %v1327
    %v1395 = vpop.f32.mrb[0].mxu0
    %v1396 = vadd.f32 0.0, %v1395
    %v1397 = vpop.f32.mrb[0].mxu0
    %1398 = vdwg.mxu0
    %v1399 = vadd.f32 %v1323, %v1396
    %v1400 = vxor.u32 %v1399, 2147483648
    %v1401 = vmul.f32 %v1400, 1.442695
    %v1402 = vpow.pop %v1401
    %v1403 = vadd.f32 %v1402, 1.0
    %v1404 = vrcp.pop %v1403
    %v1405 = vmul.f32 1.0, %v1404
    %v1406 = vtanh.pop %v1399
    %v1407 = vmul.f32 %v1405, %v1316
    %1409 = vrot.lane.b32.xlu0 %v1406, 32
    %v1410 = vpop.permute.xlu0 %1409
    %v1412 = vmul.f32 %v1405, %v1410
    %1414 = vrot.lane.b32.xlu0 %v1412, 32
    %v1415 = vpop.permute.xlu0 %1414
    %v1417 = vadd.f32 %v1407, %v1415
    %v1418 = vtanh.pop %v1417
    %1420 = vrot.lane.b32.xlu0 %v1418, 32
    %v1421 = vpop.permute.xlu0 %1420
    %v1423 = vmul.f32 %v1405, %v1421
    %v1424 = vld [vmem:[#allocation3 + $0x6] sm:$0x3]
    %1426 = vrot.lane.b32.xlu0 %v1423, 64
    %v1427 = vpop.permute.xlu0 %1426
    %v1428 = vsel %vm200, %v1427, 0
    %1430 = vmatprep.subr.mxu0 0.0
    %1431 = vmatpush1.msra.mxu0 %v1122
    %1432 = vmatprep.subr.mxu0 0.0
    %1433 = vmatpush1.msra.mxu0 %v1123
    %1434 = vmatprep.subr.mxu0 0.0
    %1435 = vmatpush1.msra.mxu0 %v1124
    %1436 = vmatprep.subr.mxu0 0.0
    %1437 = vmatpush1.msra.mxu0 %v1125
    %1438 = vmatprep.subr.mxu0 0.0
    %1439 = vmatpush1.msra.mxu0 0.0
    %1440 = vmatprep.subr.mxu0 0.0
    %1441 = vmatpush1.msra.mxu0 0.0
    %1442 = vmatprep.subr.mxu0 0.0
    %1443 = vmatpush1.msra.mxu0 0.0
    %1444 = vmatprep.subr.mxu0 0.0
    %1445 = vmatpush1.msra.mxu0 0.0
    %1446 = vmatprep.subr.mxu0 0.0
    %1447 = vmatpush1.msra.mxu0 0.0
    %1448 = vmatprep.subr.mxu0 0.0
    %1449 = vmatpush1.msra.mxu0 0.0
    %1450 = vmatprep.subr.mxu0 0.0
    %1451 = vmatpush1.msra.mxu0 0.0
    %1452 = vmatprep.subr.mxu0 0.0
    %1453 = vmatpush1.msra.mxu0 0.0
    %1454 = vmatprep.subr.mxu0 0.0
    %1455 = vmatpush1.msra.mxu0 0.0
    %1456 = vmatprep.subr.mxu0 0.0
    %1457 = vmatpush1.msra.mxu0 0.0
    %1458 = vmatprep.subr.mxu0 0.0
    %1459 = vmatpush1.msra.mxu0 0.0
    %1460 = vmatprep.subr.mxu0 0.0
    %1461 = vmatpush1.msra.mxu0 0.0
    %1462 = vmatprep.subr.mxu0 0.0
    %1463 = vmatpush1.msra.mxu0 0.0
    %1464 = vmatprep.subr.mxu0 0.0
    %1465 = vmatpush1.msra.mxu0 0.0
    %1466 = vmatprep.subr.mxu0 0.0
    %1467 = vmatpush1.msra.mxu0 0.0
    %1468 = vmatprep.subr.mxu0 0.0
    %1469 = vmatpush1.msra.mxu0 0.0
    %1470 = vmatprep.subr.mxu0 0.0
    %1471 = vmatpush1.msra.mxu0 0.0
    %1472 = vmatprep.subr.mxu0 0.0
    %1473 = vmatpush1.msra.mxu0 0.0
    %1474 = vmatprep.subr.mxu0 0.0
    %1475 = vmatpush1.msra.mxu0 0.0
    %1476 = vmatprep.subr.mxu0 0.0
    %1477 = vmatpush1.msra.mxu0 0.0
    %1478 = vmatprep.subr.mxu0 0.0
    %1479 = vmatpush1.msra.mxu0 0.0
    %1480 = vmatprep.subr.mxu0 0.0
    %1481 = vmatpush1.msra.mxu0 0.0
    %1482 = vmatprep.subr.mxu0 0.0
    %1483 = vmatpush1.msra.mxu0 0.0
    %1484 = vmatprep.subr.mxu0 0.0
    %1485 = vmatpush1.msra.mxu0 0.0
    %1486 = vmatprep.subr.mxu0 0.0
    %1487 = vmatpush1.msra.mxu0 0.0
    %1488 = vmatprep.subr.mxu0 0.0
    %1489 = vmatpush1.msra.mxu0 0.0
    %1490 = vmatprep.subr.mxu0 0.0
    %1491 = vmatpush1.msra.mxu0 0.0
    %1492 = vmatprep.subr.mxu0 0.0
    %1493 = vmatpush1.msra.mxu0 0.0
    %1494 = vmatprep.mubr.f32.mxu0 0.0
    %1495 = vmatmul.mubr.f32.gmra.mrb[0].mxu0 %v1428
    %v1496 = vpop.f32.mrb[0].mxu0
    %v1497 = vadd.f32 0.0, %v1496
    %v1498 = vpop.f32.mrb[0].mxu0
    %1499 = vdwg.mxu0
    %v1500 = vadd.f32 %v1424, %v1497
    %v1501 = vxor.u32 %v1500, 2147483648
    %v1502 = vmul.f32 %v1501, 1.442695
    %v1503 = vpow.pop %v1502
    %v1504 = vadd.f32 %v1503, 1.0
    %v1505 = vrcp.pop %v1504
    %v1506 = vmul.f32 1.0, %v1505
    %v1507 = vtanh.pop %v1500
    %v1508 = vmul.f32 %v1506, %v1417
    %1510 = vrot.lane.b32.xlu0 %v1507, 32
    %v1511 = vpop.permute.xlu0 %1510
    %v1513 = vmul.f32 %v1506, %v1511
    %1515 = vrot.lane.b32.xlu0 %v1513, 32
    %v1516 = vpop.permute.xlu0 %1515
    %v1518 = vadd.f32 %v1508, %v1516
    %v1519 = vtanh.pop %v1518
    %1521 = vrot.lane.b32.xlu0 %v1519, 32
    %v1522 = vpop.permute.xlu0 %1521
    %v1524 = vmul.f32 %v1506, %v1522
    %v1525 = vld [vmem:[#allocation3 + $0x8] sm:$0x3]
    %1527 = vrot.lane.b32.xlu0 %v1524, 64
    %v1528 = vpop.permute.xlu0 %1527
    %v1529 = vsel %vm200, %v1528, 0
    %1531 = vmatprep.subr.mxu0 0.0
    %1532 = vmatpush1.msra.mxu0 %v1122
    %1533 = vmatprep.subr.mxu0 0.0
    %1534 = vmatpush1.msra.mxu0 %v1123
    %1535 = vmatprep.subr.mxu0 0.0
    %1536 = vmatpush1.msra.mxu0 %v1124
    %1537 = vmatprep.subr.mxu0 0.0
    %1538 = vmatpush1.msra.mxu0 %v1125
    %1539 = vmatprep.subr.mxu0 0.0
    %1540 = vmatpush1.msra.mxu0 0.0
    %1541 = vmatprep.subr.mxu0 0.0
    %1542 = vmatpush1.msra.mxu0 0.0
    %1543 = vmatprep.subr.mxu0 0.0
    %1544 = vmatpush1.msra.mxu0 0.0
    %1545 = vmatprep.subr.mxu0 0.0
    %1546 = vmatpush1.msra.mxu0 0.0
    %1547 = vmatprep.subr.mxu0 0.0
    %1548 = vmatpush1.msra.mxu0 0.0
    %1549 = vmatprep.subr.mxu0 0.0
    %1550 = vmatpush1.msra.mxu0 0.0
    %1551 = vmatprep.subr.mxu0 0.0
    %1552 = vmatpush1.msra.mxu0 0.0
    %1553 = vmatprep.subr.mxu0 0.0
    %1554 = vmatpush1.msra.mxu0 0.0
    %1555 = vmatprep.subr.mxu0 0.0
    %1556 = vmatpush1.msra.mxu0 0.0
    %1557 = vmatprep.subr.mxu0 0.0
    %1558 = vmatpush1.msra.mxu0 0.0
    %1559 = vmatprep.subr.mxu0 0.0
    %1560 = vmatpush1.msra.mxu0 0.0
    %1561 = vmatprep.subr.mxu0 0.0
    %1562 = vmatpush1.msra.mxu0 0.0
    %1563 = vmatprep.subr.mxu0 0.0
    %1564 = vmatpush1.msra.mxu0 0.0
    %1565 = vmatprep.subr.mxu0 0.0
    %1566 = vmatpush1.msra.mxu0 0.0
    %1567 = vmatprep.subr.mxu0 0.0
    %1568 = vmatpush1.msra.mxu0 0.0
    %1569 = vmatprep.subr.mxu0 0.0
    %1570 = vmatpush1.msra.mxu0 0.0
    %1571 = vmatprep.subr.mxu0 0.0
    %1572 = vmatpush1.msra.mxu0 0.0
    %1573 = vmatprep.subr.mxu0 0.0
    %1574 = vmatpush1.msra.mxu0 0.0
    %1575 = vmatprep.subr.mxu0 0.0
    %1576 = vmatpush1.msra.mxu0 0.0
    %1577 = vmatprep.subr.mxu0 0.0
    %1578 = vmatpush1.msra.mxu0 0.0
    %1579 = vmatprep.subr.mxu0 0.0
    %1580 = vmatpush1.msra.mxu0 0.0
    %1581 = vmatprep.subr.mxu0 0.0
    %1582 = vmatpush1.msra.mxu0 0.0
    %1583 = vmatprep.subr.mxu0 0.0
    %1584 = vmatpush1.msra.mxu0 0.0
    %1585 = vmatprep.subr.mxu0 0.0
    %1586 = vmatpush1.msra.mxu0 0.0
    %1587 = vmatprep.subr.mxu0 0.0
    %1588 = vmatpush1.msra.mxu0 0.0
    %1589 = vmatprep.subr.mxu0 0.0
    %1590 = vmatpush1.msra.mxu0 0.0
    %1591 = vmatprep.subr.mxu0 0.0
    %1592 = vmatpush1.msra.mxu0 0.0
    %1593 = vmatprep.subr.mxu0 0.0
    %1594 = vmatpush1.msra.mxu0 0.0
    %1595 = vmatprep.mubr.f32.mxu0 0.0
    %1596 = vmatmul.mubr.f32.gmra.mrb[0].mxu0 %v1529
    %v1597 = vpop.f32.mrb[0].mxu0
    %v1598 = vadd.f32 0.0, %v1597
    %v1599 = vpop.f32.mrb[0].mxu0
    %1600 = vdwg.mxu0
    %v1601 = vadd.f32 %v1525, %v1598
    %v1602 = vxor.u32 %v1601, 2147483648
    %v1603 = vmul.f32 %v1602, 1.442695
    %v1604 = vpow.pop %v1603
    %v1605 = vadd.f32 %v1604, 1.0
    %v1606 = vrcp.pop %v1605
    %v1607 = vmul.f32 1.0, %v1606
    %v1608 = vtanh.pop %v1601
    %v1609 = vmul.f32 %v1607, %v1518
    %1611 = vrot.lane.b32.xlu0 %v1608, 32
    %v1612 = vpop.permute.xlu0 %1611
    %v1614 = vmul.f32 %v1607, %v1612
    %1616 = vrot.lane.b32.xlu0 %v1614, 32
    %v1617 = vpop.permute.xlu0 %1616
    %v1619 = vadd.f32 %v1609, %v1617
    %v1620 = vtanh.pop %v1619
    %1622 = vrot.lane.b32.xlu0 %v1620, 32
    %v1623 = vpop.permute.xlu0 %1622
    %v1625 = vmul.f32 %v1607, %v1623
    %v1626 = vld [vmem:[#allocation3 + $0xa] sm:$0x3]
    %1628 = vrot.lane.b32.xlu0 %v1625, 64
    %v1629 = vpop.permute.xlu0 %1628
    %v1630 = vsel %vm200, %v1629, 0
    %1632 = vmatprep.subr.mxu0 0.0
    %1633 = vmatpush1.msra.mxu0 %v1122
    %1634 = vmatprep.subr.mxu0 0.0
    %1635 = vmatpush1.msra.mxu0 %v1123
    %1636 = vmatprep.subr.mxu0 0.0
    %1637 = vmatpush1.msra.mxu0 %v1124
    %1638 = vmatprep.subr.mxu0 0.0
    %1639 = vmatpush1.msra.mxu0 %v1125
    %1640 = vmatprep.subr.mxu0 0.0
    %1641 = vmatpush1.msra.mxu0 0.0
    %1642 = vmatprep.subr.mxu0 0.0
    %1643 = vmatpush1.msra.mxu0 0.0
    %1644 = vmatprep.subr.mxu0 0.0
    %1645 = vmatpush1.msra.mxu0 0.0
    %1646 = vmatprep.subr.mxu0 0.0
    %1647 = vmatpush1.msra.mxu0 0.0
    %1648 = vmatprep.subr.mxu0 0.0
    %1649 = vmatpush1.msra.mxu0 0.0
    %1650 = vmatprep.subr.mxu0 0.0
    %1651 = vmatpush1.msra.mxu0 0.0
    %1652 = vmatprep.subr.mxu0 0.0
    %1653 = vmatpush1.msra.mxu0 0.0
    %1654 = vmatprep.subr.mxu0 0.0
    %1655 = vmatpush1.msra.mxu0 0.0
    %1656 = vmatprep.subr.mxu0 0.0
    %1657 = vmatpush1.msra.mxu0 0.0
    %1658 = vmatprep.subr.mxu0 0.0
    %1659 = vmatpush1.msra.mxu0 0.0
    %1660 = vmatprep.subr.mxu0 0.0
    %1661 = vmatpush1.msra.mxu0 0.0
    %1662 = vmatprep.subr.mxu0 0.0
    %1663 = vmatpush1.msra.mxu0 0.0
    %1664 = vmatprep.subr.mxu0 0.0
    %1665 = vmatpush1.msra.mxu0 0.0
    %1666 = vmatprep.subr.mxu0 0.0
    %1667 = vmatpush1.msra.mxu0 0.0
    %1668 = vmatprep.subr.mxu0 0.0
    %1669 = vmatpush1.msra.mxu0 0.0
    %1670 = vmatprep.subr.mxu0 0.0
    %1671 = vmatpush1.msra.mxu0 0.0
    %1672 = vmatprep.subr.mxu0 0.0
    %1673 = vmatpush1.msra.mxu0 0.0
    %1674 = vmatprep.subr.mxu0 0.0
    %1675 = vmatpush1.msra.mxu0 0.0
    %1676 = vmatprep.subr.mxu0 0.0
    %1677 = vmatpush1.msra.mxu0 0.0
    %1678 = vmatprep.subr.mxu0 0.0
    %1679 = vmatpush1.msra.mxu0 0.0
    %1680 = vmatprep.subr.mxu0 0.0
    %1681 = vmatpush1.msra.mxu0 0.0
    %1682 = vmatprep.subr.mxu0 0.0
    %1683 = vmatpush1.msra.mxu0 0.0
    %1684 = vmatprep.subr.mxu0 0.0
    %1685 = vmatpush1.msra.mxu0 0.0
    %1686 = vmatprep.subr.mxu0 0.0
    %1687 = vmatpush1.msra.mxu0 0.0
    %1688 = vmatprep.subr.mxu0 0.0
    %1689 = vmatpush1.msra.mxu0 0.0
    %1690 = vmatprep.subr.mxu0 0.0
    %1691 = vmatpush1.msra.mxu0 0.0
    %1692 = vmatprep.subr.mxu0 0.0
    %1693 = vmatpush1.msra.mxu0 0.0
    %1694 = vmatprep.subr.mxu0 0.0
    %1695 = vmatpush1.msra.mxu0 0.0
    %1696 = vmatprep.mubr.f32.mxu0 0.0
    %1697 = vmatmul.mubr.f32.gmra.mrb[0].mxu0 %v1630
    %v1698 = vpop.f32.mrb[0].mxu0
    %v1699 = vadd.f32 0.0, %v1698
    %v1700 = vpop.f32.mrb[0].mxu0
    %1701 = vdwg.mxu0
    %v1702 = vadd.f32 %v1626, %v1699
    %v1703 = vxor.u32 %v1702, 2147483648
    %v1704 = vmul.f32 %v1703, 1.442695
    %v1705 = vpow.pop %v1704
    %v1706 = vadd.f32 %v1705, 1.0
    %v1707 = vrcp.pop %v1706
    %v1708 = vmul.f32 1.0, %v1707
    %v1709 = vtanh.pop %v1702
    %v1710 = vmul.f32 %v1708, %v1619
    %1712 = vrot.lane.b32.xlu0 %v1709, 32
    %v1713 = vpop.permute.xlu0 %1712
    %v1715 = vmul.f32 %v1708, %v1713
    %1717 = vrot.lane.b32.xlu0 %v1715, 32
    %v1718 = vpop.permute.xlu0 %1717
    %v1720 = vadd.f32 %v1710, %v1718
    %v1721 = vtanh.pop %v1720
    %1723 = vrot.lane.b32.xlu0 %v1721, 32
    %v1724 = vpop.permute.xlu0 %1723
    %v1726 = vmul.f32 %v1708, %v1724
    %v1727 = vld [vmem:[#allocation3 + $0xc] sm:$0x3]
    %1729 = vrot.lane.b32.xlu0 %v1726, 64
    %v1730 = vpop.permute.xlu0 %1729
    %v1731 = vsel %vm200, %v1730, 0
    %1733 = vmatprep.subr.mxu0 0.0
    %1734 = vmatpush1.msra.mxu0 %v1122
    %1735 = vmatprep.subr.mxu0 0.0
    %1736 = vmatpush1.msra.mxu0 %v1123
    %1737 = vmatprep.subr.mxu0 0.0
    %1738 = vmatpush1.msra.mxu0 %v1124
    %1739 = vmatprep.subr.mxu0 0.0
    %1740 = vmatpush1.msra.mxu0 %v1125
    %1741 = vmatprep.subr.mxu0 0.0
    %1742 = vmatpush1.msra.mxu0 0.0
    %1743 = vmatprep.subr.mxu0 0.0
    %1744 = vmatpush1.msra.mxu0 0.0
    %1745 = vmatprep.subr.mxu0 0.0
    %1746 = vmatpush1.msra.mxu0 0.0
    %1747 = vmatprep.subr.mxu0 0.0
    %1748 = vmatpush1.msra.mxu0 0.0
    %1749 = vmatprep.subr.mxu0 0.0
    %1750 = vmatpush1.msra.mxu0 0.0
    %1751 = vmatprep.subr.mxu0 0.0
    %1752 = vmatpush1.msra.mxu0 0.0
    %1753 = vmatprep.subr.mxu0 0.0
    %1754 = vmatpush1.msra.mxu0 0.0
    %1755 = vmatprep.subr.mxu0 0.0
    %1756 = vmatpush1.msra.mxu0 0.0
    %1757 = vmatprep.subr.mxu0 0.0
    %1758 = vmatpush1.msra.mxu0 0.0
    %1759 = vmatprep.subr.mxu0 0.0
    %1760 = vmatpush1.msra.mxu0 0.0
    %1761 = vmatprep.subr.mxu0 0.0
    %1762 = vmatpush1.msra.mxu0 0.0
    %1763 = vmatprep.subr.mxu0 0.0
    %1764 = vmatpush1.msra.mxu0 0.0
    %1765 = vmatprep.subr.mxu0 0.0
    %1766 = vmatpush1.msra.mxu0 0.0
    %1767 = vmatprep.subr.mxu0 0.0
    %1768 = vmatpush1.msra.mxu0 0.0
    %1769 = vmatprep.subr.mxu0 0.0
    %1770 = vmatpush1.msra.mxu0 0.0
    %1771 = vmatprep.subr.mxu0 0.0
    %1772 = vmatpush1.msra.mxu0 0.0
    %1773 = vmatprep.subr.mxu0 0.0
    %1774 = vmatpush1.msra.mxu0 0.0
    %1775 = vmatprep.subr.mxu0 0.0
    %1776 = vmatpush1.msra.mxu0 0.0
    %1777 = vmatprep.subr.mxu0 0.0
    %1778 = vmatpush1.msra.mxu0 0.0
    %1779 = vmatprep.subr.mxu0 0.0
    %1780 = vmatpush1.msra.mxu0 0.0
    %1781 = vmatprep.subr.mxu0 0.0
    %1782 = vmatpush1.msra.mxu0 0.0
    %1783 = vmatprep.subr.mxu0 0.0
    %1784 = vmatpush1.msra.mxu0 0.0
    %1785 = vmatprep.subr.mxu0 0.0
    %1786 = vmatpush1.msra.mxu0 0.0
    %1787 = vmatprep.subr.mxu0 0.0
    %1788 = vmatpush1.msra.mxu0 0.0
    %1789 = vmatprep.subr.mxu0 0.0
    %1790 = vmatpush1.msra.mxu0 0.0
    %1791 = vmatprep.subr.mxu0 0.0
    %1792 = vmatpush1.msra.mxu0 0.0
    %1793 = vmatprep.subr.mxu0 0.0
    %1794 = vmatpush1.msra.mxu0 0.0
    %1795 = vmatprep.subr.mxu0 0.0
    %1796 = vmatpush1.msra.mxu0 0.0
    %1797 = vmatprep.mubr.f32.mxu0 0.0
    %1798 = vmatmul.mubr.f32.gmra.mrb[0].mxu0 %v1731
    %v1799 = vpop.f32.mrb[0].mxu0
    %v1800 = vadd.f32 0.0, %v1799
    %v1801 = vpop.f32.mrb[0].mxu0
    %1802 = vdwg.mxu0
    %v1803 = vadd.f32 %v1727, %v1800
    %v1804 = vxor.u32 %v1803, 2147483648
    %v1805 = vmul.f32 %v1804, 1.442695
    %v1806 = vpow.pop %v1805
    %v1807 = vadd.f32 %v1806, 1.0
    %v1808 = vrcp.pop %v1807
    %v1809 = vmul.f32 1.0, %v1808
    %v1810 = vtanh.pop %v1803
    %v1811 = vmul.f32 %v1809, %v1720
    %1813 = vrot.lane.b32.xlu0 %v1810, 32
    %v1814 = vpop.permute.xlu0 %1813
    %v1816 = vmul.f32 %v1809, %v1814
    %1818 = vrot.lane.b32.xlu0 %v1816, 32
    %v1819 = vpop.permute.xlu0 %1818
    %v1821 = vadd.f32 %v1811, %v1819
    %v1822 = vtanh.pop %v1821
    %1824 = vrot.lane.b32.xlu0 %v1822, 32
    %v1825 = vpop.permute.xlu0 %1824
    %v1827 = vmul.f32 %v1809, %v1825
    %v1828 = vld [vmem:[#allocation3 + $0xe] sm:$0x3]
    %1830 = vrot.lane.b32.xlu0 %v1827, 64
    %v1831 = vpop.permute.xlu0 %1830
    %v1832 = vsel %vm200, %v1831, 0
    %1834 = vmatprep.subr.mxu0 0.0
    %1835 = vmatpush1.msra.mxu0 %v1122
    %1836 = vmatprep.subr.mxu0 0.0
    %1837 = vmatpush1.msra.mxu0 %v1123
    %1838 = vmatprep.subr.mxu0 0.0
    %1839 = vmatpush1.msra.mxu0 %v1124
    %1840 = vmatprep.subr.mxu0 0.0
    %1841 = vmatpush1.msra.mxu0 %v1125
    %1842 = vmatprep.subr.mxu0 0.0
    %1843 = vmatpush1.msra.mxu0 0.0
    %1844 = vmatprep.subr.mxu0 0.0
    %1845 = vmatpush1.msra.mxu0 0.0
    %1846 = vmatprep.subr.mxu0 0.0
    %1847 = vmatpush1.msra.mxu0 0.0
    %1848 = vmatprep.subr.mxu0 0.0
    %1849 = vmatpush1.msra.mxu0 0.0
    %1850 = vmatprep.subr.mxu0 0.0
    %1851 = vmatpush1.msra.mxu0 0.0
    %1852 = vmatprep.subr.mxu0 0.0
    %1853 = vmatpush1.msra.mxu0 0.0
    %1854 = vmatprep.subr.mxu0 0.0
    %1855 = vmatpush1.msra.mxu0 0.0
    %1856 = vmatprep.subr.mxu0 0.0
    %1857 = vmatpush1.msra.mxu0 0.0
    %1858 = vmatprep.subr.mxu0 0.0
    %1859 = vmatpush1.msra.mxu0 0.0
    %1860 = vmatprep.subr.mxu0 0.0
    %1861 = vmatpush1.msra.mxu0 0.0
    %1862 = vmatprep.subr.mxu0 0.0
    %1863 = vmatpush1.msra.mxu0 0.0
    %1864 = vmatprep.subr.mxu0 0.0
    %1865 = vmatpush1.msra.mxu0 0.0
    %1866 = vmatprep.subr.mxu0 0.0
    %1867 = vmatpush1.msra.mxu0 0.0
    %1868 = vmatprep.subr.mxu0 0.0
    %1869 = vmatpush1.msra.mxu0 0.0
    %1870 = vmatprep.subr.mxu0 0.0
    %1871 = vmatpush1.msra.mxu0 0.0
    %1872 = vmatprep.subr.mxu0 0.0
    %1873 = vmatpush1.msra.mxu0 0.0
    %1874 = vmatprep.subr.mxu0 0.0
    %1875 = vmatpush1.msra.mxu0 0.0
    %1876 = vmatprep.subr.mxu0 0.0
    %1877 = vmatpush1.msra.mxu0 0.0
    %1878 = vmatprep.subr.mxu0 0.0
    %1879 = vmatpush1.msra.mxu0 0.0
    %1880 = vmatprep.subr.mxu0 0.0
    %1881 = vmatpush1.msra.mxu0 0.0
    %1882 = vmatprep.subr.mxu0 0.0
    %1883 = vmatpush1.msra.mxu0 0.0
    %1884 = vmatprep.subr.mxu0 0.0
    %1885 = vmatpush1.msra.mxu0 0.0
    %1886 = vmatprep.subr.mxu0 0.0
    %1887 = vmatpush1.msra.mxu0 0.0
    %1888 = vmatprep.subr.mxu0 0.0
    %1889 = vmatpush1.msra.mxu0 0.0
    %1890 = vmatprep.subr.mxu0 0.0
    %1891 = vmatpush1.msra.mxu0 0.0
    %1892 = vmatprep.subr.mxu0 0.0
    %1893 = vmatpush1.msra.mxu0 0.0
    %1894 = vmatprep.subr.mxu0 0.0
    %1895 = vmatpush1.msra.mxu0 0.0
    %1896 = vmatprep.subr.mxu0 0.0
    %1897 = vmatpush1.msra.mxu0 0.0
    %1898 = vmatprep.mubr.f32.mxu0 0.0
    %1899 = vmatmul.mubr.f32.gmra.mrb[0].mxu0 %v1832
    %v1900 = vpop.f32.mrb[0].mxu0
    %v1901 = vadd.f32 0.0, %v1900
    %v1902 = vpop.f32.mrb[0].mxu0
    %1903 = vdwg.mxu0
    %v1904 = vadd.f32 %v1828, %v1901
    %v1905 = vxor.u32 %v1904, 2147483648
    %v1906 = vmul.f32 %v1905, 1.442695
    %v1907 = vpow.pop %v1906
    %v1908 = vadd.f32 %v1907, 1.0
    %v1909 = vrcp.pop %v1908
    %v1910 = vmul.f32 1.0, %v1909
    %v1911 = vtanh.pop %v1904
    %v1912 = vmul.f32 %v1910, %v1821
    %1914 = vrot.lane.b32.xlu0 %v1911, 32
    %v1915 = vpop.permute.xlu0 %1914
    %v1917 = vmul.f32 %v1910, %v1915
    %1919 = vrot.lane.b32.xlu0 %v1917, 32
    %v1920 = vpop.permute.xlu0 %1919
    %v1922 = vadd.f32 %v1912, %v1920
    %v1923 = vtanh.pop %v1922
    %1925 = vrot.lane.b32.xlu0 %v1923, 32
    %v1926 = vpop.permute.xlu0 %1925
    %v1928 = vmul.f32 %v1910, %v1926
    %1930 = vrot.lane.b32.xlu0 %v1928, 64
    %v1931 = vpop.permute.xlu0 %1930
    %v1933 = vsel %vm303, %v1931, 0.0
    %1934 = vadd.xlane.f32.xlu0 %v1933
    %v1935 = vpop.xlane.xlu0 %1934
    %v1936 = vrcp.pop 32.0
    %v1937 = vmul.f32 %v1935, %v1936
    %v1938 = vsub.f32 %v1928, %v1937
    %v1939 = vmul.f32 %v1938, %v1938
    %1941 = vrot.lane.b32.xlu0 %v1939, 64
    %v1942 = vpop.permute.xlu0 %1941
    %v1944 = vsel %vm303, %v1942, 0.0
    %1945 = vadd.xlane.f32.xlu0 %v1944
    %v1946 = vpop.xlane.xlu0 %1945
    %v1947 = vmul.f32 %v1946, %v1936
    %v1948 = vadd.f32 %v1947, 1e-05
    %v1949 = vrsqrt.pop %v1948
    %v1950 = vmul.f32 %v1938, %v1949
    %v1951 = vld [vmem:[#allocation9] sm:$0x1]
    %v1953 = vlaneseq
    %v1954 = vshrl.u32 %v1953, 7
    %v1955 = vsub.s32 0, %v1954
    %v1956 = vrot.slane %v1951, %v1955
    %1957 = vrot.lane.b32.xlu0 %v1956, 64
    %v1958 = vpop.permute.xlu0 %1957
    %v1960 = vmul.f32 %v1950, %v1958
    %v1961 = vld [vmem:[#allocation10] sm:$0x1]
    %v1963 = vlaneseq
    %v1964 = vshrl.u32 %v1963, 7
    %v1965 = vsub.s32 0, %v1964
    %v1966 = vrot.slane %v1961, %v1965
    %1967 = vrot.lane.b32.xlu0 %v1966, 64
    %v1968 = vpop.permute.xlu0 %1967
    %v1970 = vadd.f32 %v1960, %v1968
    %v1971 = vld [vmem:[%s9] sm:$0xff]
    %v1972 = vld [vmem:[%s9 + $0x8] sm:$0xff]
    %v1973 = vld [vmem:[%s9 + $0x10] sm:$0xff]
    %v1974 = vld [vmem:[%s9 + $0x18] sm:$0xff]
    %v1975 = vld [vmem:[#allocation12] sm:$0x1]
    %v1977 = vlaneseq
    %v1978 = vshrl.u32 %v1977, 7
    %v1979 = vsub.s32 0, %v1978
    %v1980 = vrot.slane %v1975, %v1979
    %1983 = vrot.lane.b32.xlu0 %v1970, 64
    %v1984 = vpop.permute.xlu0 %1983
    %v1985 = vsel %vm200, %v1984, 0
    %1987 = vmatprep.subr.mxu0 0.0
    %1988 = vmatpush1.msra.mxu0 %v1971
    %1989 = vmatprep.subr.mxu0 0.0
    %1990 = vmatpush1.msra.mxu0 %v1972
    %1991 = vmatprep.subr.mxu0 0.0
    %1992 = vmatpush1.msra.mxu0 %v1973
    %1993 = vmatprep.subr.mxu0 0.0
    %1994 = vmatpush1.msra.mxu0 %v1974
    %1995 = vmatprep.subr.mxu0 0.0
    %1996 = vmatpush1.msra.mxu0 0.0
    %1997 = vmatprep.subr.mxu0 0.0
    %1998 = vmatpush1.msra.mxu0 0.0
    %1999 = vmatprep.subr.mxu0 0.0
    %2000 = vmatpush1.msra.mxu0 0.0
    %2001 = vmatprep.subr.mxu0 0.0
    %2002 = vmatpush1.msra.mxu0 0.0
    %2003 = vmatprep.subr.mxu0 0.0
    %2004 = vmatpush1.msra.mxu0 0.0
    %2005 = vmatprep.subr.mxu0 0.0
    %2006 = vmatpush1.msra.mxu0 0.0
    %2007 = vmatprep.subr.mxu0 0.0
    %2008 = vmatpush1.msra.mxu0 0.0
    %2009 = vmatprep.subr.mxu0 0.0
    %2010 = vmatpush1.msra.mxu0 0.0
    %2011 = vmatprep.subr.mxu0 0.0
    %2012 = vmatpush1.msra.mxu0 0.0
    %2013 = vmatprep.subr.mxu0 0.0
    %2014 = vmatpush1.msra.mxu0 0.0
    %2015 = vmatprep.subr.mxu0 0.0
    %2016 = vmatpush1.msra.mxu0 0.0
    %2017 = vmatprep.subr.mxu0 0.0
    %2018 = vmatpush1.msra.mxu0 0.0
    %2019 = vmatprep.subr.mxu0 0.0
    %2020 = vmatpush1.msra.mxu0 0.0
    %2021 = vmatprep.subr.mxu0 0.0
    %2022 = vmatpush1.msra.mxu0 0.0
    %2023 = vmatprep.subr.mxu0 0.0
    %2024 = vmatpush1.msra.mxu0 0.0
    %2025 = vmatprep.subr.mxu0 0.0
    %2026 = vmatpush1.msra.mxu0 0.0
    %2027 = vmatprep.subr.mxu0 0.0
    %2028 = vmatpush1.msra.mxu0 0.0
    %2029 = vmatprep.subr.mxu0 0.0
    %2030 = vmatpush1.msra.mxu0 0.0
    %2031 = vmatprep.subr.mxu0 0.0
    %2032 = vmatpush1.msra.mxu0 0.0
    %2033 = vmatprep.subr.mxu0 0.0
    %2034 = vmatpush1.msra.mxu0 0.0
    %2035 = vmatprep.subr.mxu0 0.0
    %2036 = vmatpush1.msra.mxu0 0.0
    %2037 = vmatprep.subr.mxu0 0.0
    %2038 = vmatpush1.msra.mxu0 0.0
    %2039 = vmatprep.subr.mxu0 0.0
    %2040 = vmatpush1.msra.mxu0 0.0
    %2041 = vmatprep.subr.mxu0 0.0
    %2042 = vmatpush1.msra.mxu0 0.0
    %2043 = vmatprep.subr.mxu0 0.0
    %2044 = vmatpush1.msra.mxu0 0.0
    %2045 = vmatprep.subr.mxu0 0.0
    %2046 = vmatpush1.msra.mxu0 0.0
    %2047 = vmatprep.subr.mxu0 0.0
    %2048 = vmatpush1.msra.mxu0 0.0
    %2049 = vmatprep.subr.mxu0 0.0
    %2050 = vmatpush1.msra.mxu0 0.0
    %2051 = vmatprep.mubr.f32.mxu0 0.0
    %2052 = vmatmul.mubr.f32.gmra.mrb[0].mxu0 %v1985
    %v2053 = vpop.f32.mrb[0].mxu0
    %v2054 = vadd.f32 %v1980, %v2053
    %v2055 = vpop.f32.mrb[0].mxu0
    %2056 = vdwg.mxu0
    %vm2057 = vcmask 25600
    %v2058 = vsel %vm2057, %v2054, -inf
    %2059 = vmax.xlane.f32.xlu0 %v2058
    %v2060 = vpop.xlane.xlu0 %2059
    %v2061 = vsub.f32 %v2054, %v2060
    %v2062 = vmul.f32 %v2061, 1.442695
    %v2063 = vpow.pop %v2062
    %v2064 = vsel %vm2057, %v2063, 0.0
    %2065 = vadd.xlane.f32.xlu0 %v2064
    %v2066 = vpop.xlane.xlu0 %2065
    %v2067 = vlog2.pop %v2066
    %v2068 = vmul.f32 %v2067, 0.6931472
    %v2069 = vadd.f32 %v2068, %v2060
    %v2070 = vsub.f32 %v2054, %v2069
    %2071 = vst.msk [vmem:[#allocation13] sm:$0x3] %vm2057, %v2070
    // Predicated region
    $region66: #{lstm_model_forward.1} parent=1 // pred_check
      _
    $region67: #{lstm_model_forward.1} parent=1 // pred_check_branch
      %2073 = sbr.rel (0) target = $region69
    $region68: #{lstm_model_forward.1} parent=1 // pred_region
      %s2075 = ssub.s32 32, 32
      %2076 = vsyncadd [#allocation6], %s2075
      %s2078 = sshll.u32 [#allocation13], 4
      %s2079 = int_to_ptr.vmem [resolvable:$true] %s2078
      %2081 = dma.vmem_to_hbm [thread:$0]  %s2079, 32, %s11, [#allocation6]
    $region69: #{lstm_model_forward.1} parent=1 // pred_fallthru
      _
    // Predicated region
    $region70: #{lstm_model_forward.1} parent=1 // pred_check
      _
    $region71: #{lstm_model_forward.1} parent=1 // pred_check_branch
      %2083 = sbr.rel (0) target = $region73
    $region72: #{lstm_model_forward.1} parent=1 // pred_region
      %2084 = dma.done [#allocation6], 32
    $region73: #{lstm_model_forward.1} parent=1 // pred_fallthru
      _
    %2085 = vsyncpa [#allocation5], 1
    %2086 = vsyncpa [#allocation8], 1
    %2087 = vsyncpa [#allocation11], 1
    %2088 = vsyncpa [#allocation6], 1

</llo_original>
